<compile_context>
chip_gen: v5e
topology: v5e:2x2
jax: 0.10.0
libtpu: 0.0.40
codegen_flags: <defaults>
</compile_context>

<pallas_src>
import math
import functools

import jax
import jax.numpy as jnp
from jax import lax
from jax.experimental import pallas as pl
from jax.experimental.pallas import tpu as pltpu


def _vq_kernel(x_ref, emb_ref, embt_ref, esq_ref, q_ref, kl_ref, kl_acc,
               *, num_embeddings):
    t = pl.program_id(1)

    # Zero the per-n KL accumulator at the first tile of every n.
    @pl.when(t == 0)
    def _():
        kl_acc[...] = jnp.zeros_like(kl_acc)

    x = x_ref[0].astype(jnp.float32)        # (D, T)  positions on lanes
    e = emb_ref[0]                          # (M, D)
    e_t = embt_ref[0].astype(jnp.float32)   # (D, M)
    e_sq = esq_ref[0]                       # (M, 1)  f32 (precomputed)

    x_sq = jnp.sum(x * x, axis=0, keepdims=True)                     # (1, T)

    # Cross term <e_m, x_t>: single-pass bf16 MXU matmul, f32 accumulate.
    ex = lax.dot_general(
        e.astype(jnp.bfloat16), x.astype(jnp.bfloat16),
        (((1,), (0,)), ((), ())),
        preferred_element_type=jnp.float32)                          # (M, T)

    # logits = -distances = -(||x||^2 + ||e||^2 - 2 <e, x>)
    logits = 2.0 * ex - e_sq - x_sq                                  # (M, T)

    # log-softmax / softmax over the M codebook entries (sublane axis).
    mx = jnp.max(logits, axis=0, keepdims=True)                      # (1, T)
    shifted = jnp.exp(logits - mx)                                   # (M, T)
    denom = jnp.sum(shifted, axis=0, keepdims=True)                  # (1, T)
    log_probs = logits - (mx + jnp.log(denom))                       # (M, T)
    probs = jnp.exp(log_probs)                                       # (M, T)

    # KL(softmax || uniform) terms; scalar reduction deferred to the epilogue.
    log_m = jnp.float32(math.log(num_embeddings))
    kl_acc[...] += jnp.where(probs > 0, probs * (log_probs + log_m), 0.0)

    # Eval-mode hard sample: argmax over M (first index on ties), realized with
    # max / compare / min-of-iota so it stays on plain reduce ops.
    row = lax.broadcasted_iota(jnp.int32, logits.shape, 0)           # (M, T)
    idx = jnp.min(jnp.where(logits == mx, row, num_embeddings),
                  axis=0, keepdims=True)                             # (1, T)

    # Exact re-quantization: select the chosen embedding row per position.
    if num_embeddings <= 256:
        q = jnp.zeros(x.shape, jnp.float32)                          # (D, T)
        for m in range(num_embeddings):
            q = jnp.where(idx == m, e_t[:, m:m + 1], q)
    else:
        # TODO(synk): DMA gather for very large codebooks; fall back to an
        # exact multi-pass one-hot matmul (each output picks a single f32 row).
        onehot = (row == idx).astype(jnp.float32)                    # (M, T)
        q = lax.dot_general(e_t, onehot, (((1,), (0,)), ((), ())),
                            preferred_element_type=jnp.float32,
                            precision=lax.Precision.HIGHEST)         # (D, T)

    q_ref[0] = q.astype(q_ref.dtype)

    # Per-n partial KL output (summed over n in the wrapper).
    @pl.when(t == pl.num_programs(1) - 1)
    def _():
        kl_ref[...] = jnp.sum(kl_acc[...]).reshape(1, 1, 1)


def _choose_tile(length, d, m, *, cap=4096, vmem_budget_bytes=8 * 1024 * 1024):
    """Largest tile (multiple of 128, dividing `length`) within a VMEM budget.

    Budget is conservative enough for v7x's 64 MiB VMEM (32 MiB scoped)."""
    # Rough per-row f32 footprint: a handful of (M, T) intermediates + the
    # (M, T) KL accumulator + double-buffered (D, T) input/output blocks.
    per_row_bytes = (8 * m + 6 * d) * 4
    cap = min(cap, max(128, vmem_budget_bytes // per_row_bytes))
    t = min(cap, length)
    t -= t % 128
    t = max(t, 128)
    while length % t != 0:
        t -= 128
    return t


def vq_embedding_gs_soft_forward(x, embedding, *, max_tile=4096):
    """Eval-mode forward of VQEmbeddingGSSoft.

    Args:
      x: (B, C, H, W), C == N * D.
      embedding: (N, M, D).
    Returns:
      (KL scalar, quantized (B, C, H, W)).
    """
    B, C, H, W = x.shape
    N, M, D = embedding.shape
    assert C == N * D
    L = B * H * W
    assert L % 128 == 0, "B*H*W must be a multiple of 128"
    tile = _choose_tile(L, D, M, cap=max_tile)

    # Lane-dense layout: (B, C, H, W) -> (N, D, L), positions on the lane axis.
    x_ndl = (x.reshape(B, N, D, H, W)
              .transpose(1, 2, 0, 3, 4)
              .reshape(N, D, L))
    emb_t = jnp.transpose(embedding, (0, 2, 1))                      # (N, D, M)
    e_sq = jnp.sum(embedding.astype(jnp.float32) ** 2,
                   axis=2, keepdims=True)                            # (N, M, 1)

    kernel = functools.partial(_vq_kernel, num_embeddings=M)

    q_ndl, kl_parts = pl.pallas_call(
        kernel,
        grid_spec=pltpu.PrefetchScalarGridSpec(
            num_scalar_prefetch=0,
            grid=(N, L // tile),
            in_specs=[
                pl.BlockSpec((1, D, tile), lambda n, t: (n, 0, t)),
                pl.BlockSpec((1, M, D), lambda n, t: (n, 0, 0)),
                pl.BlockSpec((1, D, M), lambda n, t: (n, 0, 0)),
                pl.BlockSpec((1, M, 1), lambda n, t: (n, 0, 0)),
            ],
            out_specs=[
                pl.BlockSpec((1, D, tile), lambda n, t: (n, 0, t)),
                pl.BlockSpec((1, 1, 1), lambda n, t: (n, 0, 0)),
            ],
            scratch_shapes=[pltpu.VMEM((M, tile), jnp.float32)],
        ),
        out_shape=(
            jax.ShapeDtypeStruct((N, D, L), x.dtype),
            jax.ShapeDtypeStruct((N, 1, 1), jnp.float32),
        ),
        compiler_params=pltpu.CompilerParams(
            dimension_semantics=("parallel", "arbitrary"),
            vmem_limit_bytes=32 * 1024 * 1024),
    )(x_ndl, embedding, emb_t, e_sq)

    # KL.sum(dim=(0,2,3,4)).mean() == total_sum / B
    KL = jnp.sum(kl_parts) / B

    quantized = (q_ndl.reshape(N, D, B, H, W)
                 .transpose(2, 0, 1, 3, 4)
                 .reshape(B, C, H, W))
    return KL, quantized


def _reference_forward(x, embedding):
    """Pure-JAX reference matching the PyTorch eval-mode forward
    (same single-pass bf16 precision on the cross-term matmul)."""
    B, C, H, W = x.shape
    N, M, D = embedding.shape
    x_flat = (x.reshape(B, N, D, H, W).transpose(1, 0, 3, 4, 2)
               .reshape(N, -1, D)).astype(jnp.float32)
    emb = embedding.astype(jnp.float32)
    e_sq = jnp.sum(emb ** 2, axis=2)[:, None, :]                     # (N, 1, M)
    x_sq = jnp.sum(x_flat ** 2, axis=2, keepdims=True)               # (N, L, 1)
    xe = jnp.einsum('nld,nmd->nlm',
                    x_flat.astype(jnp.bfloat16), emb.astype(jnp.bfloat16),
                    preferred_element_type=jnp.float32)              # (N, L, M)
    logits = 2.0 * xe - e_sq - x_sq
    log_probs = logits - jax.scipy.special.logsumexp(logits, axis=-1,
                                                     keepdims=True)
    probs = jnp.exp(log_probs)
    kl = jnp.where(probs > 0, probs * (log_probs + math.log(M)), 0.0)
    KL = jnp.sum(kl) / B
    idx = jnp.argmax(logits, axis=-1)                                # (N, L)
    quantized = jnp.take_along_axis(emb, idx[..., None], axis=1)     # (N, L, D)
    quantized = (quantized.reshape(N, B, H, W, D)
                 .transpose(1, 0, 4, 2, 3)
                 .reshape(B, C, H, W)).astype(x.dtype)
    return KL, quantized


if __name__ == "__main__":
    key = jax.random.PRNGKey(0)
    kx, ke = jax.random.split(key)

    # small shapes: latent_dim N=2, num_embeddings M=16, embedding_dim D=8
    B, N, M, D, H, W = 2, 2, 16, 8, 16, 16
    C = N * D                                      # 16
    x = jax.random.normal(kx, (B, C, H, W), dtype=jnp.float32)
    # nn.init.uniform_(embedding, -1/M, 1/M)
    embedding = jax.random.uniform(ke, (N, M, D), dtype=jnp.float32,
                                   minval=-1.0 / M, maxval=1.0 / M)

    KL, quantized = vq_embedding_gs_soft_forward(x, embedding)
    jax.block_until_ready((KL, quantized))

    KL_ref, q_expected = _reference_forward(x, embedding)
    assert quantized.shape == (B, C, H, W)
    assert jnp.allclose(KL, KL_ref, rtol=1e-3, atol=1e-3), (float(KL), float(KL_ref))
    assert jnp.allclose(quantized, q_expected, rtol=1e-4, atol=1e-5), (
        float(jnp.max(jnp.abs(quantized - q_expected))))

    print("KERNEL_OK")
</pallas_src>

<mosaic_0001>
module attributes {stable_mosaic.version = 11 : i64} {
  func.func @_vq_kernel(%arg0: i32, %arg1: i32, %arg2: memref<1x8x512xf32, #tpu.memory_space<vmem>>, %arg3: memref<1x16x8xf32, #tpu.memory_space<vmem>>, %arg4: memref<1x8x16xf32, #tpu.memory_space<vmem>>, %arg5: memref<1x16x1xf32, #tpu.memory_space<vmem>>, %arg6: memref<1x8x512xf32, #tpu.memory_space<vmem>>, %arg7: memref<1x1x1xf32, #tpu.memory_space<vmem>>, %arg8: memref<16x512xf32, #tpu.memory_space<vmem>>) attributes {dimension_semantics = [#tpu.dimension_semantics<parallel>, #tpu.dimension_semantics<arbitrary>], iteration_bounds = array<i64: 2, 1>, scalar_prefetch = 0 : i64, scratch_operands = 1 : i64, tpu.core_type = #tpu.core_type<tc>, window_params = [{transform_indices = @transform_0, window_bounds = array<i64: 1, 8, 512>}, {transform_indices = @transform_1, window_bounds = array<i64: 1, 16, 8>}, {transform_indices = @transform_2, window_bounds = array<i64: 1, 8, 16>}, {transform_indices = @transform_3, window_bounds = array<i64: 1, 16, 1>}, {transform_indices = @transform_4, window_bounds = array<i64: 1, 8, 512>}, {transform_indices = @transform_5, window_bounds = array<i64: 1, 1, 1>}]} {
    %c0_i32 = arith.constant 0 : i32
    %0 = arith.cmpi eq, %arg1, %c0_i32 : i32
    %1 = arith.extui %0 : i1 to i32
    %c0_i32_0 = arith.constant 0 : i32
    %2 = arith.cmpi ne, %1, %c0_i32_0 : i32
    scf.if %2 {
      %cst_31 = arith.constant 0.000000e+00 : f32
      %187 = vector.broadcast %cst_31 : f32 to vector<16x512xf32>
      %c0_32 = arith.constant 0 : index
      %c0_33 = arith.constant 0 : index
      %188 = vector.load %arg8[%c0_32, %c0_33] : memref<16x512xf32, #tpu.memory_space<vmem>>, vector<16x512xf32>
      tpu.vector_store %arg8[%c0_32, %c0_33], %187 {strides = array<i32>} : memref<16x512xf32, #tpu.memory_space<vmem>>, vector<16x512xf32>,
    } else {
    }
    %c0 = arith.constant 0 : index
    %c0_1 = arith.constant 0 : index
    %c0_2 = arith.constant 0 : index
    %3 = vector.load %arg2[%c0, %c0_1, %c0_2] : memref<1x8x512xf32, #tpu.memory_space<vmem>>, vector<1x8x512xf32>
    %4 = vector.shape_cast %3 : vector<1x8x512xf32> to vector<8x512xf32>
    %c0_3 = arith.constant 0 : index
    %c0_4 = arith.constant 0 : index
    %c0_5 = arith.constant 0 : index
    %5 = vector.load %arg3[%c0_3, %c0_4, %c0_5] : memref<1x16x8xf32, #tpu.memory_space<vmem>>, vector<1x16x8xf32>
    %6 = vector.shape_cast %5 : vector<1x16x8xf32> to vector<16x8xf32>
    %c0_6 = arith.constant 0 : index
    %c0_7 = arith.constant 0 : index
    %c0_8 = arith.constant 0 : index
    %7 = vector.load %arg4[%c0_6, %c0_7, %c0_8] : memref<1x8x16xf32, #tpu.memory_space<vmem>>, vector<1x8x16xf32>
    %8 = vector.shape_cast %7 : vector<1x8x16xf32> to vector<8x16xf32>
    %c0_9 = arith.constant 0 : index
    %c0_10 = arith.constant 0 : index
    %c0_11 = arith.constant 0 : index
    %9 = vector.load %arg5[%c0_9, %c0_10, %c0_11] : memref<1x16x1xf32, #tpu.memory_space<vmem>>, vector<1x16x1xf32>
    %10 = vector.shape_cast %9 : vector<1x16x1xf32> to vector<16x1xf32>
    %11 = arith.mulf %4, %4 : vector<8x512xf32>
    %cst = arith.constant dense<0.000000e+00> : vector<512xf32>
    %12 = vector.multi_reduction <add>, %11, %cst [0] : vector<8x512xf32> to vector<512xf32>
    %13 = vector.shape_cast %12 : vector<512xf32> to vector<1x512xf32>
    %14 = arith.truncf %6 : vector<16x8xf32> to vector<16x8xbf16>
    %15 = arith.truncf %4 : vector<8x512xf32> to vector<8x512xbf16>
    %cst_12 = arith.constant dense<0.000000e+00> : vector<16x512xf32>
    %16 = tpu.matmul %14, %15, %cst_12 {dimension_numbers = #tpu.dot_dimension_numbers<[1], [0], [0], [1], [0, 0, 1, 1], [], []>} : vector<16x8xbf16>, vector<8x512xbf16>, vector<16x512xf32> -> vector<16x512xf32>
    %cst_13 = arith.constant 2.000000e+00 : f32
    %17 = vector.broadcast %cst_13 : f32 to vector<16x512xf32>
    %18 = arith.mulf %17, %16 : vector<16x512xf32>
    %19 = vector.broadcast %10 : vector<16x1xf32> to vector<16x512xf32>
    %20 = arith.subf %18, %19 : vector<16x512xf32>
    %21 = vector.broadcast %13 : vector<1x512xf32> to vector<16x512xf32>
    %22 = arith.subf %20, %21 : vector<16x512xf32>
    %cst_14 = arith.constant dense<0xFF800000> : vector<512xf32>
    %23 = vector.multi_reduction <maximumf>, %22, %cst_14 [0] : vector<16x512xf32> to vector<512xf32>
    %24 = vector.shape_cast %23 : vector<512xf32> to vector<1x512xf32>
    %25 = vector.broadcast %24 : vector<1x512xf32> to vector<16x512xf32>
    %26 = arith.subf %22, %25 : vector<16x512xf32>
    %27 = math.exp %26 : vector<16x512xf32>
    %cst_15 = arith.constant dense<0.000000e+00> : vector<512xf32>
    %28 = vector.multi_reduction <add>, %27, %cst_15 [0] : vector<16x512xf32> to vector<512xf32>
    %29 = vector.shape_cast %28 : vector<512xf32> to vector<1x512xf32>
    %30 = math.log %29 : vector<1x512xf32>
    %31 = arith.addf %24, %30 : vector<1x512xf32>
    %32 = vector.broadcast %31 : vector<1x512xf32> to vector<16x512xf32>
    %33 = arith.subf %22, %32 : vector<16x512xf32>
    %34 = math.exp %33 : vector<16x512xf32>
    %c0_16 = arith.constant 0 : index
    %c0_17 = arith.constant 0 : index
    %35 = vector.load %arg8[%c0_16, %c0_17] : memref<16x512xf32, #tpu.memory_space<vmem>>, vector<16x512xf32>
    %cst_18 = arith.constant 0.000000e+00 : f32
    %36 = vector.broadcast %cst_18 : f32 to vector<16x512xf32>
    %37 = arith.cmpf ogt, %34, %36 : vector<16x512xf32>
    %cst_19 = arith.constant 2.77258873 : f32
    %38 = vector.broadcast %cst_19 : f32 to vector<16x512xf32>
    %39 = arith.addf %33, %38 : vector<16x512xf32>
    %40 = arith.mulf %34, %39 : vector<16x512xf32>
    %cst_20 = arith.constant 0.000000e+00 : f32
    %41 = vector.broadcast %cst_20 : f32 to vector<16x512xf32>
    %42 = arith.select %37, %40, %41 : vector<16x512xi1>, vector<16x512xf32>
    %43 = arith.addf %35, %42 : vector<16x512xf32>
    %c0_21 = arith.constant 0 : index
    %c0_22 = arith.constant 0 : index
    %44 = vector.load %arg8[%c0_21, %c0_22] : memref<16x512xf32, #tpu.memory_space<vmem>>, vector<16x512xf32>
    tpu.vector_store %arg8[%c0_21, %c0_22], %43 {strides = array<i32>} : memref<16x512xf32, #tpu.memory_space<vmem>>, vector<16x512xf32>,
    %45 = tpu.iota {dimensions = array<i32: 0>} : vector<16x512xi32>
    %46 = vector.broadcast %24 : vector<1x512xf32> to vector<16x512xf32>
    %47 = arith.cmpf oeq, %22, %46 : vector<16x512xf32>
    %c16_i32 = arith.constant 16 : i32
    %48 = vector.broadcast %c16_i32 : i32 to vector<16x512xi32>
    %49 = arith.select %47, %45, %48 : vector<16x512xi1>, vector<16x512xi32>
    %cst_23 = arith.constant dense<2147483647> : vector<512xi32>
    %50 = vector.multi_reduction <minsi>, %49, %cst_23 [0] : vector<16x512xi32> to vector<512xi32>
    %51 = vector.shape_cast %50 : vector<512xi32> to vector<1x512xi32>
    %cst_24 = arith.constant 0.000000e+00 : f32
    %52 = vector.broadcast %cst_24 : f32 to vector<8x512xf32>
    %c0_i32_25 = arith.constant 0 : i32
    %53 = vector.broadcast %c0_i32_25 : i32 to vector<1x512xi32>
    %54 = arith.cmpi eq, %51, %53 : vector<1x512xi32>
    %55 = vector.extract_strided_slice %8 {offsets = [0, 0], sizes = [8, 1], strides = [1, 1]} : vector<8x16xf32> to vector<8x1xf32>
    %56 = vector.shape_cast %54 : vector<1x512xi1> to vector<1x512xi1>
    %57 = vector.broadcast %56 : vector<1x512xi1> to vector<8x512xi1>
    %58 = vector.shape_cast %55 : vector<8x1xf32> to vector<8x1xf32>
    %59 = vector.broadcast %58 : vector<8x1xf32> to vector<8x512xf32>
    %60 = arith.select %57, %59, %52 : vector<8x512xi1>, vector<8x512xf32>
    %c1_i32 = arith.constant 1 : i32
    %61 = vector.broadcast %c1_i32 : i32 to vector<1x512xi32>
    %62 = arith.cmpi eq, %51, %61 : vector<1x512xi32>
    %63 = vector.extract_strided_slice %8 {offsets = [0, 1], sizes = [8, 1], strides = [1, 1]} : vector<8x16xf32> to vector<8x1xf32>
    %64 = vector.shape_cast %62 : vector<1x512xi1> to vector<1x512xi1>
    %65 = vector.broadcast %64 : vector<1x512xi1> to vector<8x512xi1>
    %66 = vector.shape_cast %63 : vector<8x1xf32> to vector<8x1xf32>
    %67 = vector.broadcast %66 : vector<8x1xf32> to vector<8x512xf32>
    %68 = arith.select %65, %67, %60 : vector<8x512xi1>, vector<8x512xf32>
    %c2_i32 = arith.constant 2 : i32
    %69 = vector.broadcast %c2_i32 : i32 to vector<1x512xi32>
    %70 = arith.cmpi eq, %51, %69 : vector<1x512xi32>
    %71 = vector.extract_strided_slice %8 {offsets = [0, 2], sizes = [8, 1], strides = [1, 1]} : vector<8x16xf32> to vector<8x1xf32>
    %72 = vector.shape_cast %70 : vector<1x512xi1> to vector<1x512xi1>
    %73 = vector.broadcast %72 : vector<1x512xi1> to vector<8x512xi1>
    %74 = vector.shape_cast %71 : vector<8x1xf32> to vector<8x1xf32>
    %75 = vector.broadcast %74 : vector<8x1xf32> to vector<8x512xf32>
    %76 = arith.select %73, %75, %68 : vector<8x512xi1>, vector<8x512xf32>
    %c3_i32 = arith.constant 3 : i32
    %77 = vector.broadcast %c3_i32 : i32 to vector<1x512xi32>
    %78 = arith.cmpi eq, %51, %77 : vector<1x512xi32>
    %79 = vector.extract_strided_slice %8 {offsets = [0, 3], sizes = [8, 1], strides = [1, 1]} : vector<8x16xf32> to vector<8x1xf32>
    %80 = vector.shape_cast %78 : vector<1x512xi1> to vector<1x512xi1>
    %81 = vector.broadcast %80 : vector<1x512xi1> to vector<8x512xi1>
    %82 = vector.shape_cast %79 : vector<8x1xf32> to vector<8x1xf32>
    %83 = vector.broadcast %82 : vector<8x1xf32> to vector<8x512xf32>
    %84 = arith.select %81, %83, %76 : vector<8x512xi1>, vector<8x512xf32>
    %c4_i32 = arith.constant 4 : i32
    %85 = vector.broadcast %c4_i32 : i32 to vector<1x512xi32>
    %86 = arith.cmpi eq, %51, %85 : vector<1x512xi32>
    %87 = vector.extract_strided_slice %8 {offsets = [0, 4], sizes = [8, 1], strides = [1, 1]} : vector<8x16xf32> to vector<8x1xf32>
    %88 = vector.shape_cast %86 : vector<1x512xi1> to vector<1x512xi1>
    %89 = vector.broadcast %88 : vector<1x512xi1> to vector<8x512xi1>
    %90 = vector.shape_cast %87 : vector<8x1xf32> to vector<8x1xf32>
    %91 = vector.broadcast %90 : vector<8x1xf32> to vector<8x512xf32>
    %92 = arith.select %89, %91, %84 : vector<8x512xi1>, vector<8x512xf32>
    %c5_i32 = arith.constant 5 : i32
    %93 = vector.broadcast %c5_i32 : i32 to vector<1x512xi32>
    %94 = arith.cmpi eq, %51, %93 : vector<1x512xi32>
    %95 = vector.extract_strided_slice %8 {offsets = [0, 5], sizes = [8, 1], strides = [1, 1]} : vector<8x16xf32> to vector<8x1xf32>
    %96 = vector.shape_cast %94 : vector<1x512xi1> to vector<1x512xi1>
    %97 = vector.broadcast %96 : vector<1x512xi1> to vector<8x512xi1>
    %98 = vector.shape_cast %95 : vector<8x1xf32> to vector<8x1xf32>
    %99 = vector.broadcast %98 : vector<8x1xf32> to vector<8x512xf32>
    %100 = arith.select %97, %99, %92 : vector<8x512xi1>, vector<8x512xf32>
    %c6_i32 = arith.constant 6 : i32
    %101 = vector.broadcast %c6_i32 : i32 to vector<1x512xi32>
    %102 = arith.cmpi eq, %51, %101 : vector<1x512xi32>
    %103 = vector.extract_strided_slice %8 {offsets = [0, 6], sizes = [8, 1], strides = [1, 1]} : vector<8x16xf32> to vector<8x1xf32>
    %104 = vector.shape_cast %102 : vector<1x512xi1> to vector<1x512xi1>
    %105 = vector.broadcast %104 : vector<1x512xi1> to vector<8x512xi1>
    %106 = vector.shape_cast %103 : vector<8x1xf32> to vector<8x1xf32>
    %107 = vector.broadcast %106 : vector<8x1xf32> to vector<8x512xf32>
    %108 = arith.select %105, %107, %100 : vector<8x512xi1>, vector<8x512xf32>
    %c7_i32 = arith.constant 7 : i32
    %109 = vector.broadcast %c7_i32 : i32 to vector<1x512xi32>
    %110 = arith.cmpi eq, %51, %109 : vector<1x512xi32>
    %111 = vector.extract_strided_slice %8 {offsets = [0, 7], sizes = [8, 1], strides = [1, 1]} : vector<8x16xf32> to vector<8x1xf32>
    %112 = vector.shape_cast %110 : vector<1x512xi1> to vector<1x512xi1>
    %113 = vector.broadcast %112 : vector<1x512xi1> to vector<8x512xi1>
    %114 = vector.shape_cast %111 : vector<8x1xf32> to vector<8x1xf32>
    %115 = vector.broadcast %114 : vector<8x1xf32> to vector<8x512xf32>
    %116 = arith.select %113, %115, %108 : vector<8x512xi1>, vector<8x512xf32>
    %c8_i32 = arith.constant 8 : i32
    %117 = vector.broadcast %c8_i32 : i32 to vector<1x512xi32>
    %118 = arith.cmpi eq, %51, %117 : vector<1x512xi32>
    %119 = vector.extract_strided_slice %8 {offsets = [0, 8], sizes = [8, 1], strides = [1, 1]} : vector<8x16xf32> to vector<8x1xf32>
    %120 = vector.shape_cast %118 : vector<1x512xi1> to vector<1x512xi1>
    %121 = vector.broadcast %120 : vector<1x512xi1> to vector<8x512xi1>
    %122 = vector.shape_cast %119 : vector<8x1xf32> to vector<8x1xf32>
    %123 = vector.broadcast %122 : vector<8x1xf32> to vector<8x512xf32>
    %124 = arith.select %121, %123, %116 : vector<8x512xi1>, vector<8x512xf32>
    %c9_i32 = arith.constant 9 : i32
    %125 = vector.broadcast %c9_i32 : i32 to vector<1x512xi32>
    %126 = arith.cmpi eq, %51, %125 : vector<1x512xi32>
    %127 = vector.extract_strided_slice %8 {offsets = [0, 9], sizes = [8, 1], strides = [1, 1]} : vector<8x16xf32> to vector<8x1xf32>
    %128 = vector.shape_cast %126 : vector<1x512xi1> to vector<1x512xi1>
    %129 = vector.broadcast %128 : vector<1x512xi1> to vector<8x512xi1>
    %130 = vector.shape_cast %127 : vector<8x1xf32> to vector<8x1xf32>
    %131 = vector.broadcast %130 : vector<8x1xf32> to vector<8x512xf32>
    %132 = arith.select %129, %131, %124 : vector<8x512xi1>, vector<8x512xf32>
    %c10_i32 = arith.constant 10 : i32
    %133 = vector.broadcast %c10_i32 : i32 to vector<1x512xi32>
    %134 = arith.cmpi eq, %51, %133 : vector<1x512xi32>
    %135 = vector.extract_strided_slice %8 {offsets = [0, 10], sizes = [8, 1], strides = [1, 1]} : vector<8x16xf32> to vector<8x1xf32>
    %136 = vector.shape_cast %134 : vector<1x512xi1> to vector<1x512xi1>
    %137 = vector.broadcast %136 : vector<1x512xi1> to vector<8x512xi1>
    %138 = vector.shape_cast %135 : vector<8x1xf32> to vector<8x1xf32>
    %139 = vector.broadcast %138 : vector<8x1xf32> to vector<8x512xf32>
    %140 = arith.select %137, %139, %132 : vector<8x512xi1>, vector<8x512xf32>
    %c11_i32 = arith.constant 11 : i32
    %141 = vector.broadcast %c11_i32 : i32 to vector<1x512xi32>
    %142 = arith.cmpi eq, %51, %141 : vector<1x512xi32>
    %143 = vector.extract_strided_slice %8 {offsets = [0, 11], sizes = [8, 1], strides = [1, 1]} : vector<8x16xf32> to vector<8x1xf32>
    %144 = vector.shape_cast %142 : vector<1x512xi1> to vector<1x512xi1>
    %145 = vector.broadcast %144 : vector<1x512xi1> to vector<8x512xi1>
    %146 = vector.shape_cast %143 : vector<8x1xf32> to vector<8x1xf32>
    %147 = vector.broadcast %146 : vector<8x1xf32> to vector<8x512xf32>
    %148 = arith.select %145, %147, %140 : vector<8x512xi1>, vector<8x512xf32>
    %c12_i32 = arith.constant 12 : i32
    %149 = vector.broadcast %c12_i32 : i32 to vector<1x512xi32>
    %150 = arith.cmpi eq, %51, %149 : vector<1x512xi32>
    %151 = vector.extract_strided_slice %8 {offsets = [0, 12], sizes = [8, 1], strides = [1, 1]} : vector<8x16xf32> to vector<8x1xf32>
    %152 = vector.shape_cast %150 : vector<1x512xi1> to vector<1x512xi1>
    %153 = vector.broadcast %152 : vector<1x512xi1> to vector<8x512xi1>
    %154 = vector.shape_cast %151 : vector<8x1xf32> to vector<8x1xf32>
    %155 = vector.broadcast %154 : vector<8x1xf32> to vector<8x512xf32>
    %156 = arith.select %153, %155, %148 : vector<8x512xi1>, vector<8x512xf32>
    %c13_i32 = arith.constant 13 : i32
    %157 = vector.broadcast %c13_i32 : i32 to vector<1x512xi32>
    %158 = arith.cmpi eq, %51, %157 : vector<1x512xi32>
    %159 = vector.extract_strided_slice %8 {offsets = [0, 13], sizes = [8, 1], strides = [1, 1]} : vector<8x16xf32> to vector<8x1xf32>
    %160 = vector.shape_cast %158 : vector<1x512xi1> to vector<1x512xi1>
    %161 = vector.broadcast %160 : vector<1x512xi1> to vector<8x512xi1>
    %162 = vector.shape_cast %159 : vector<8x1xf32> to vector<8x1xf32>
    %163 = vector.broadcast %162 : vector<8x1xf32> to vector<8x512xf32>
    %164 = arith.select %161, %163, %156 : vector<8x512xi1>, vector<8x512xf32>
    %c14_i32 = arith.constant 14 : i32
    %165 = vector.broadcast %c14_i32 : i32 to vector<1x512xi32>
    %166 = arith.cmpi eq, %51, %165 : vector<1x512xi32>
    %167 = vector.extract_strided_slice %8 {offsets = [0, 14], sizes = [8, 1], strides = [1, 1]} : vector<8x16xf32> to vector<8x1xf32>
    %168 = vector.shape_cast %166 : vector<1x512xi1> to vector<1x512xi1>
    %169 = vector.broadcast %168 : vector<1x512xi1> to vector<8x512xi1>
    %170 = vector.shape_cast %167 : vector<8x1xf32> to vector<8x1xf32>
    %171 = vector.broadcast %170 : vector<8x1xf32> to vector<8x512xf32>
    %172 = arith.select %169, %171, %164 : vector<8x512xi1>, vector<8x512xf32>
    %c15_i32 = arith.constant 15 : i32
    %173 = vector.broadcast %c15_i32 : i32 to vector<1x512xi32>
    %174 = arith.cmpi eq, %51, %173 : vector<1x512xi32>
    %175 = vector.extract_strided_slice %8 {offsets = [0, 15], sizes = [8, 1], strides = [1, 1]} : vector<8x16xf32> to vector<8x1xf32>
    %176 = vector.shape_cast %174 : vector<1x512xi1> to vector<1x512xi1>
    %177 = vector.broadcast %176 : vector<1x512xi1> to vector<8x512xi1>
    %178 = vector.shape_cast %175 : vector<8x1xf32> to vector<8x1xf32>
    %179 = vector.broadcast %178 : vector<8x1xf32> to vector<8x512xf32>
    %180 = arith.select %177, %179, %172 : vector<8x512xi1>, vector<8x512xf32>
    %c0_26 = arith.constant 0 : index
    %c0_27 = arith.constant 0 : index
    %c0_28 = arith.constant 0 : index
    %181 = vector.load %arg6[%c0_26, %c0_27, %c0_28] : memref<1x8x512xf32, #tpu.memory_space<vmem>>, vector<1x8x512xf32>
    %182 = vector.shape_cast %181 : vector<1x8x512xf32> to vector<8x512xf32>
    %183 = vector.shape_cast %180 : vector<8x512xf32> to vector<1x8x512xf32>
    tpu.vector_store %arg6[%c0_26, %c0_27, %c0_28], %183 {strides = array<i32>} : memref<1x8x512xf32, #tpu.memory_space<vmem>>, vector<1x8x512xf32>,
    %c0_i32_29 = arith.constant 0 : i32
    %184 = arith.cmpi eq, %arg1, %c0_i32_29 : i32
    %185 = arith.extui %184 : i1 to i32
    %c0_i32_30 = arith.constant 0 : i32
    %186 = arith.cmpi ne, %185, %c0_i32_30 : i32
    scf.if %186 {
      %c0_31 = arith.constant 0 : index
      %c0_32 = arith.constant 0 : index
      %187 = vector.load %arg8[%c0_31, %c0_32] : memref<16x512xf32, #tpu.memory_space<vmem>>, vector<16x512xf32>
      %188 = vector.shape_cast %187 : vector<16x512xf32> to vector<1x16x512xf32>
      %cst_33 = arith.constant dense<0.000000e+00> : vector<1xf32>
      %189 = vector.multi_reduction <add>, %188, %cst_33 [1, 2] : vector<1x16x512xf32> to vector<1xf32>
      %190 = vector.shape_cast %189 : vector<1xf32> to vector<1x1x1xf32>
      %191 = vector.extract %190[0, 0, 0] : f32 from vector<1x1x1xf32>
      %192 = vector.broadcast %191 : f32 to vector<1x1x1xf32>
      %c0_34 = arith.constant 0 : index
      %c0_35 = arith.constant 0 : index
      %c0_36 = arith.constant 0 : index
      %193 = vector.load %arg7[%c0_34, %c0_35, %c0_36] : memref<1x1x1xf32, #tpu.memory_space<vmem>>, vector<1x1x1xf32>
      tpu.vector_store %arg7[%c0_34, %c0_35, %c0_36], %192 {strides = array<i32>} : memref<1x1x1xf32, #tpu.memory_space<vmem>>, vector<1x1x1xf32>,
    } else {
    }
    return
  }
  func.func @transform_0(%arg0: i32, %arg1: i32) -> (i32, i32, i32) {
    %c0_i32 = arith.constant 0 : i32
    %c0_i32_0 = arith.constant 0 : i32
    return %arg0, %c0_i32, %arg1 : i32, i32, i32
  }
  func.func @transform_1(%arg0: i32, %arg1: i32) -> (i32, i32, i32) {
    %c0_i32 = arith.constant 0 : i32
    %c0_i32_0 = arith.constant 0 : i32
    %c0_i32_1 = arith.constant 0 : i32
    return %arg0, %c0_i32, %c0_i32_0 : i32, i32, i32
  }
  func.func @transform_2(%arg0: i32, %arg1: i32) -> (i32, i32, i32) {
    %c0_i32 = arith.constant 0 : i32
    %c0_i32_0 = arith.constant 0 : i32
    %c0_i32_1 = arith.constant 0 : i32
    return %arg0, %c0_i32, %c0_i32_0 : i32, i32, i32
  }
  func.func @transform_3(%arg0: i32, %arg1: i32) -> (i32, i32, i32) {
    %c0_i32 = arith.constant 0 : i32
    %c0_i32_0 = arith.constant 0 : i32
    %c0_i32_1 = arith.constant 0 : i32
    return %arg0, %c0_i32, %c0_i32_0 : i32, i32, i32
  }
  func.func @transform_4(%arg0: i32, %arg1: i32) -> (i32, i32, i32) {
    %c0_i32 = arith.constant 0 : i32
    %c0_i32_0 = arith.constant 0 : i32
    return %arg0, %c0_i32, %arg1 : i32, i32, i32
  }
  func.func @transform_5(%arg0: i32, %arg1: i32) -> (i32, i32, i32) {
    %c0_i32 = arith.constant 0 : i32
    %c0_i32_0 = arith.constant 0 : i32
    %c0_i32_1 = arith.constant 0 : i32
    return %arg0, %c0_i32, %c0_i32_0 : i32, i32, i32
  }
}

</mosaic_0001>

<llo_original>
// kernel: tpu_custom_call.1
$region0: #{tpu_custom_call.1}
  #allocation0 [shape = 'u32[]', space=smem, size = 0x4, offset = 0x4, fixed_abs, tag = 'smem constant byte address 0x4 - core index']
  #allocation1 [shape = 'u32[72,128]{1,0:T(1,128)}', space=vmem, size = 0x9000, scoped, tag = 'internal scratch']
  #allocation2 [shape = 'f32[16,512]{1,0:T(8,128)}', space=vmem, size = 0x8000, scoped, tag = 'scratch operand']
  %s0 = inlined_call_operand.vmem [shape: f32[2,8,512], index: 0, kind: input, shape index: {}]
  %s1 = inlined_call_operand.vmem [shape: f32[2,16,8], index: 1, kind: input, shape index: {}]
  %s2 = inlined_call_operand.vmem [shape: f32[2,8,16], index: 2, kind: input, shape index: {}]
  %s3 = inlined_call_operand.vmem [shape: f32[2,16,1], index: 3, kind: input, shape index: {}]
  %s4 = inlined_call_operand.hbm [shape: f32[2,8,512], index: 4, kind: output, shape index: {0}]
  %s5 = inlined_call_operand.vmem [shape: f32[2,1,1], index: 5, kind: output, shape index: {1}]
  %6 = xla_tuple %s4, %s5
  %s7 = sld [smem:[#allocation0]]
  $region65: #{tpu_custom_call.1} parent=0
    _
  %s9 = ssub.s32 1, %s7
  %s10 = scalar_select 0, %s9, %s7
  $region1: #{tpu_custom_call.1} parent=0
    #allocation3 [shape = 'u8[32768]{0}', space=vmem, size = 0x8000, scoped, tag = 'output window, operand 0']
    #allocation4 [shape = 's32[2]{0}', space=sflag, size = 0x8, scoped, tag = 'scoped memory for tpu_custom_call.1']
    %11 = vsyncpa [#allocation4], 0
    %s12 = scalar_lea.sflag [#allocation4], 1
    %13 = vsyncpa %s12, 0
    loop: start=0, step=1, limit=4
    $region2: #{tpu_custom_call.1} parent=1 // loop_pre_header
      _
    $region3: #{tpu_custom_call.1} parent=1 // loop_header
      %s15 = sphi 0, %s19
      %p16 = scmp.ge.s32.totalorder %s15, 4
      %s22 = sphi 0, %s34
      %s23 = sphi 0, %s30
      %s24 = sphi 0, %s22
      %s25 = sphi 0, %s23
      %s26 = sphi 0, %s24
      %s27 = sphi 0, %s25
      %s39 = sphi 0, %s41
      %s42 = sphi 0, %s39
      %s43 = sphi 0, %s42
      %s59 = sphi 0, %s43
      %s65 = sphi 0, %s67
      %s68 = sphi 0, %s65
      %s69 = sphi 0, %s68
      %s85 = sphi 0, %s69
      %s91 = sphi 0, %s93
      %s94 = sphi 0, %s91
      %s95 = sphi 0, %s94
      %s111 = sphi 0, %s95
      %s117 = sphi 0, %s119
      %s120 = sphi 0, %s117
      %s121 = sphi 0, %s120
      %s137 = sphi 0, %s121
      %s145 = sphi 0, %s147
      %s148 = sphi 0, %s145
      %s149 = sphi 0, %s148
      %s165 = sphi 0, %s149
      %s171 = sphi 0, %s173
      %s174 = sphi 0, %s171
      %s175 = sphi 0, %s174
      %s191 = sphi 0, %s175
    $region4: #{tpu_custom_call.1} parent=1 // loop_header_branch
      %18 = sbr.rel (%p16) target = $region8
    $region5: #{tpu_custom_call.1} parent=1 // loop_body
      %s20 = ssub.s32 %s15, 1
      %s21 = ssub.s32 %s15, 2
      %s28 = sadd.s32 1, %s23
      %p29 = scmp.ge.s32.totalorder %s28, 1
      %s30 = scalar_select %p29, 0, %s28
      %s31 = sadd.s32 1, %s22
      %s32 = scalar_select %p29, %s31, %s22
      %p33 = scmp.ge.s32.totalorder %s32, 2
      %s34 = scalar_select %p33, 0, %s32
      %s35 = ssub.s32 %s22, %s34
      %s36 = ssub.s32 %s23, %s30
      %s37 = sor.u32 %s35, %s36
      %p38 = scmp.eq.s32.totalorder %s37, 0
      %s40 = sadd.s32 %s39, 1
      %s41 = scalar_select %p38, %s39, %s40
      %p44 = pneg %p38
      %p45 = scmp.eq.s32.totalorder %s15, 1
      %p46 = por %p44, %p45
      %p47 = scmp.ne.s32.totalorder %s39, %s42
      %p48 = scmp.eq.s32.totalorder %s15, 0
      %p49 = por %p47, %p48
      %p50 = scmp.ne.s32.totalorder %s39, %s42
      %p51 = scmp.eq.s32.totalorder %s20, 1
      %p52 = por %p50, %p51
      %p53 = scmp.ne.s32.totalorder %s42, %s43
      %p54 = scmp.eq.s32.totalorder %s20, 0
      %p55 = por %p53, %p54
      %p56 = scmp.ne.s32.totalorder %s42, %s43
      %p57 = scmp.eq.s32.totalorder %s21, 1
      %p58 = por %p56, %p57
      %p60 = scmp.ne.s32.totalorder %s43, %s59
      %p61 = scmp.eq.s32.totalorder %s21, 0
      %p62 = por %p60, %p61
      %s63 = ssub.s32 %s22, %s34
      %p64 = scmp.eq.s32.totalorder %s63, 0
      %s66 = sadd.s32 %s65, 1
      %s67 = scalar_select %p64, %s65, %s66
      %p70 = pneg %p64
      %p71 = scmp.eq.s32.totalorder %s15, 1
      %p72 = por %p70, %p71
      %p73 = scmp.ne.s32.totalorder %s65, %s68
      %p74 = scmp.eq.s32.totalorder %s15, 0
      %p75 = por %p73, %p74
      %p76 = scmp.ne.s32.totalorder %s65, %s68
      %p77 = scmp.eq.s32.totalorder %s20, 1
      %p78 = por %p76, %p77
      %p79 = scmp.ne.s32.totalorder %s68, %s69
      %p80 = scmp.eq.s32.totalorder %s20, 0
      %p81 = por %p79, %p80
      %p82 = scmp.ne.s32.totalorder %s68, %s69
      %p83 = scmp.eq.s32.totalorder %s21, 1
      %p84 = por %p82, %p83
      %p86 = scmp.ne.s32.totalorder %s69, %s85
      %p87 = scmp.eq.s32.totalorder %s21, 0
      %p88 = por %p86, %p87
      %s89 = ssub.s32 %s22, %s34
      %p90 = scmp.eq.s32.totalorder %s89, 0
      %s92 = sadd.s32 %s91, 1
      %s93 = scalar_select %p90, %s91, %s92
      %p96 = pneg %p90
      %p97 = scmp.eq.s32.totalorder %s15, 1
      %p98 = por %p96, %p97
      %p99 = scmp.ne.s32.totalorder %s91, %s94
      %p100 = scmp.eq.s32.totalorder %s15, 0
      %p101 = por %p99, %p100
      %p102 = scmp.ne.s32.totalorder %s91, %s94
      %p103 = scmp.eq.s32.totalorder %s20, 1
      %p104 = por %p102, %p103
      %p105 = scmp.ne.s32.totalorder %s94, %s95
      %p106 = scmp.eq.s32.totalorder %s20, 0
      %p107 = por %p105, %p106
      %p108 = scmp.ne.s32.totalorder %s94, %s95
      %p109 = scmp.eq.s32.totalorder %s21, 1
      %p110 = por %p108, %p109
      %p112 = scmp.ne.s32.totalorder %s95, %s111
      %p113 = scmp.eq.s32.totalorder %s21, 0
      %p114 = por %p112, %p113
      %s115 = ssub.s32 %s22, %s34
      %p116 = scmp.eq.s32.totalorder %s115, 0
      %s118 = sadd.s32 %s117, 1
      %s119 = scalar_select %p116, %s117, %s118
      %p122 = pneg %p116
      %p123 = scmp.eq.s32.totalorder %s15, 1
      %p124 = por %p122, %p123
      %p125 = scmp.ne.s32.totalorder %s117, %s120
      %p126 = scmp.eq.s32.totalorder %s15, 0
      %p127 = por %p125, %p126
      %p128 = scmp.ne.s32.totalorder %s117, %s120
      %p129 = scmp.eq.s32.totalorder %s20, 1
      %p130 = por %p128, %p129
      %p131 = scmp.ne.s32.totalorder %s120, %s121
      %p132 = scmp.eq.s32.totalorder %s20, 0
      %p133 = por %p131, %p132
      %p134 = scmp.ne.s32.totalorder %s120, %s121
      %p135 = scmp.eq.s32.totalorder %s21, 1
      %p136 = por %p134, %p135
      %p138 = scmp.ne.s32.totalorder %s121, %s137
      %p139 = scmp.eq.s32.totalorder %s21, 0
      %p140 = por %p138, %p139
      %s141 = ssub.s32 %s22, %s34
      %s142 = ssub.s32 %s23, %s30
      %s143 = sor.u32 %s141, %s142
      %p144 = scmp.eq.s32.totalorder %s143, 0
      %s146 = sadd.s32 %s145, 1
      %s147 = scalar_select %p144, %s145, %s146
      %p150 = pneg %p144
      %p151 = scmp.eq.s32.totalorder %s15, 1
      %p152 = por %p150, %p151
      %p153 = scmp.ne.s32.totalorder %s145, %s148
      %p154 = scmp.eq.s32.totalorder %s15, 0
      %p155 = por %p153, %p154
      %p156 = scmp.ne.s32.totalorder %s145, %s148
      %p157 = scmp.eq.s32.totalorder %s20, 1
      %p158 = por %p156, %p157
      %p159 = scmp.ne.s32.totalorder %s148, %s149
      %p160 = scmp.eq.s32.totalorder %s20, 0
      %p161 = por %p159, %p160
      %p162 = scmp.ne.s32.totalorder %s148, %s149
      %p163 = scmp.eq.s32.totalorder %s21, 1
      %p164 = por %p162, %p163
      %p166 = scmp.ne.s32.totalorder %s149, %s165
      %p167 = scmp.eq.s32.totalorder %s21, 0
      %p168 = por %p166, %p167
      %s169 = ssub.s32 %s22, %s34
      %p170 = scmp.eq.s32.totalorder %s169, 0
      %s172 = sadd.s32 %s171, 1
      %s173 = scalar_select %p170, %s171, %s172
      %p176 = pneg %p170
      %p177 = scmp.eq.s32.totalorder %s15, 1
      %p178 = por %p176, %p177
      %p179 = scmp.ne.s32.totalorder %s171, %s174
      %p180 = scmp.eq.s32.totalorder %s15, 0
      %p181 = por %p179, %p180
      %p182 = scmp.ne.s32.totalorder %s171, %s174
      %p183 = scmp.eq.s32.totalorder %s20, 1
      %p184 = por %p182, %p183
      %p185 = scmp.ne.s32.totalorder %s174, %s175
      %p186 = scmp.eq.s32.totalorder %s20, 0
      %p187 = por %p185, %p186
      %p188 = scmp.ne.s32.totalorder %s174, %s175
      %p189 = scmp.eq.s32.totalorder %s21, 1
      %p190 = por %p188, %p189
      %p192 = scmp.ne.s32.totalorder %s175, %s191
      %p193 = scmp.eq.s32.totalorder %s21, 0
      %p194 = por %p192, %p193
      %p195 = scmp.le.s32.totalorder 1, %s15
      %p196 = scmp.lt.s32.totalorder %s15, 3
      %p197 = pnand %p195, %p196
      %p198 = pneg %p197
      // Predicated region
      $region9: #{tpu_custom_call.1} parent=5 // pred_check
        _
      $region10: #{tpu_custom_call.1} parent=5 // pred_check_branch
        %200 = sbr.rel (%p197) target = $region12
      $region11: #{tpu_custom_call.1} parent=5 // pred_region
        %s201 = ssub.s32 %s15, 1
      $region12: #{tpu_custom_call.1} parent=5 // pred_fallthru
        _
      %p202 = scmp.lt.s32.totalorder %s15, 2
      // Predicated region
      $region13: #{tpu_custom_call.1} parent=5 // pred_check
        %p203 = pneg %p202
      $region14: #{tpu_custom_call.1} parent=5 // pred_check_branch
        %205 = sbr.rel (%p203) target = $region16
      $region15: #{tpu_custom_call.1} parent=5 // pred_region
        // Predicated region
        $region17: #{tpu_custom_call.1} parent=15 // pred_check
          %p206 = pneg %p49
        $region18: #{tpu_custom_call.1} parent=15 // pred_check_branch
          %208 = sbr.rel (%p206) target = $region20
        $region19: #{tpu_custom_call.1} parent=15 // pred_region
          %s209 = smul.u32 4, %s23
          %p210 = scmp.lt.s32.totalorder %s22, 1
          %s211 = scalar_select %p210, %s22, 1
          %p212 = scmp.lt.s32.totalorder %s209, 3
          %s213 = scalar_select %p212, %s209, 3
          %s214 = smul.addr %s211, 4
          %s215 = sadd.s32 %s213, %s214
          %s216 = smul.addr %s215, 8
          %s217 = scalar_lea.vmem %s0, %s216
          %s218 = smul.u32 4, %s23
        $region20: #{tpu_custom_call.1} parent=15 // pred_fallthru
          _
        // Predicated region
        $region21: #{tpu_custom_call.1} parent=15 // pred_check
          %p219 = pneg %p75
        $region22: #{tpu_custom_call.1} parent=15 // pred_check_branch
          %221 = sbr.rel (%p219) target = $region24
        $region23: #{tpu_custom_call.1} parent=15 // pred_region
          %p222 = scmp.lt.s32.totalorder %s22, 1
          %s223 = scalar_select %p222, %s22, 1
          %s224 = smul.addr %s223, 2
          %s225 = smul.addr %s224, 8
          %s226 = scalar_lea.vmem %s1, %s225
        $region24: #{tpu_custom_call.1} parent=15 // pred_fallthru
          _
        // Predicated region
        $region25: #{tpu_custom_call.1} parent=15 // pred_check
          %p227 = pneg %p101
        $region26: #{tpu_custom_call.1} parent=15 // pred_check_branch
          %229 = sbr.rel (%p227) target = $region28
        $region27: #{tpu_custom_call.1} parent=15 // pred_region
          %p230 = scmp.lt.s32.totalorder %s22, 1
          %s231 = scalar_select %p230, %s22, 1
          %s232 = smul.addr %s231, 8
          %s233 = scalar_lea.vmem %s2, %s232
        $region28: #{tpu_custom_call.1} parent=15 // pred_fallthru
          _
        // Predicated region
        $region29: #{tpu_custom_call.1} parent=15 // pred_check
          %p234 = pneg %p127
        $region30: #{tpu_custom_call.1} parent=15 // pred_check_branch
          %236 = sbr.rel (%p234) target = $region32
        $region31: #{tpu_custom_call.1} parent=15 // pred_region
          %p237 = scmp.lt.s32.totalorder %s22, 1
          %s238 = scalar_select %p237, %s22, 1
          %s239 = smul.addr %s238, 2
          %s240 = smul.addr %s239, 8
          %s241 = scalar_lea.vmem %s3, %s240
        $region32: #{tpu_custom_call.1} parent=15 // pred_fallthru
          _
      $region16: #{tpu_custom_call.1} parent=5 // pred_fallthru
        _
      %p242 = scmp.le.s32.totalorder 1, %s15
      %p243 = scmp.lt.s32.totalorder %s15, 3
      %p244 = pnand %p242, %p243
      %p245 = pneg %p244
      // Predicated region
      $region33: #{tpu_custom_call.1} parent=5 // pred_check
        _
      $region34: #{tpu_custom_call.1} parent=5 // pred_check_branch
        %247 = sbr.rel (%p244) target = $region36
      $region35: #{tpu_custom_call.1} parent=5 // pred_region
        %s248 = ssub.s32 %s15, 1
        %s249 = smul.u32 4, %s25
        %p250 = scmp.lt.s32.totalorder %s24, 1
        %s251 = scalar_select %p250, %s24, 1
        %p252 = scmp.lt.s32.totalorder %s249, 3
        %s253 = scalar_select %p252, %s249, 3
        %s254 = smul.addr %s251, 4
        %s255 = sadd.s32 %s253, %s254
        %s256 = smul.addr %s255, 8
        %s257 = scalar_lea.vmem %s0, %s256
        %p258 = pneg %p55
        %p259 = pneg %p52
        %p260 = scmp.lt.s32.totalorder %s24, 1
        %s261 = scalar_select %p260, %s24, 1
        %s262 = smul.addr %s261, 2
        %s263 = smul.addr %s262, 8
        %s264 = scalar_lea.vmem %s1, %s263
        %p265 = pneg %p81
        %p266 = pneg %p78
        %p267 = scmp.lt.s32.totalorder %s24, 1
        %s268 = scalar_select %p267, %s24, 1
        %s269 = smul.addr %s268, 8
        %s270 = scalar_lea.vmem %s2, %s269
        %p271 = pneg %p107
        %p272 = pneg %p104
        %p273 = scmp.lt.s32.totalorder %s24, 1
        %s274 = scalar_select %p273, %s24, 1
        %s275 = smul.addr %s274, 2
        %s276 = smul.addr %s275, 8
        %s277 = scalar_lea.vmem %s3, %s276
        %p278 = pneg %p133
        %p279 = pneg %p130
        %p280 = pneg %p161
        %p281 = pneg %p158
        %s282 = sand.u32 %s148, 1
        %s283 = scalar_lea.sflag [#allocation4], %s282
        %s284 = sand.u32 %s148, 1
        %s285 = smul.addr %s284, 32
        %s286 = scalar_lea.vmem [#allocation3], %s285
        %p287 = pneg %p187
        %p288 = pneg %p184
        %p289 = scmp.lt.s32.totalorder %s24, 1
        %s290 = scalar_select %p289, %s24, 1
        %s291 = scalar_lea.vmem %s5, %s290
        %s292 = smul.u32 4, %s25
        %p293 = scmp.lt.s32.totalorder %s24, 1
        %s294 = scalar_select %p293, %s24, 1
        %p295 = scmp.lt.s32.totalorder %s292, 3
        %s296 = scalar_select %p295, %s292, 3
        %s297 = smul.addr %s294, 4
        %s298 = sadd.s32 %s296, %s297
        %s299 = smul.addr %s298, 8
        %s300 = scalar_lea.vmem %s0, %s299
        %s301 = smul.u32 4, %s25
        %p302 = scmp.lt.s32.totalorder %s24, 1
        %s303 = scalar_select %p302, %s24, 1
        %s304 = smul.addr %s303, 2
        %s305 = smul.addr %s304, 8
        %s306 = scalar_lea.vmem %s1, %s305
        %p307 = scmp.lt.s32.totalorder %s24, 1
        %s308 = scalar_select %p307, %s24, 1
        %s309 = smul.addr %s308, 8
        %s310 = scalar_lea.vmem %s2, %s309
        %p311 = scmp.lt.s32.totalorder %s24, 1
        %s312 = scalar_select %p311, %s24, 1
        %s313 = smul.addr %s312, 2
        %s314 = smul.addr %s313, 8
        %s315 = scalar_lea.vmem %s3, %s314
        %s316 = smul.u32 4, %s25
        %p317 = scmp.lt.s32.totalorder %s24, 1
        %s318 = scalar_select %p317, %s24, 1
        %s319 = scalar_lea.vmem %s5, %s318
        %p321 = scmp.eq.s32.totalorder %s25, 0
        // Predicated region
        $region37: #{tpu_custom_call.1} parent=35 // pred_check
          %p322 = pneg %p321
        $region38: #{tpu_custom_call.1} parent=35 // pred_check_branch
          %324 = sbr.rel (%p322) target = $region40
        $region39: #{tpu_custom_call.1} parent=35 // pred_region
          %325 = vst [vmem:[#allocation2] sm:$0xff] 0.0
          %326 = vst [vmem:[#allocation2 + $0x8] sm:$0xff] 0.0
          %327 = vst [vmem:[#allocation2 + $0x10] sm:$0xff] 0.0
          %328 = vst [vmem:[#allocation2 + $0x18] sm:$0xff] 0.0
          %329 = vst [vmem:[#allocation2 + $0x20] sm:$0xff] 0.0
          %330 = vst [vmem:[#allocation2 + $0x28] sm:$0xff] 0.0
          %331 = vst [vmem:[#allocation2 + $0x30] sm:$0xff] 0.0
          %332 = vst [vmem:[#allocation2 + $0x38] sm:$0xff] 0.0
        $region40: #{tpu_custom_call.1} parent=35 // pred_fallthru
          _
        %v333 = vld [vmem:[%s300] sm:$0xff]
        %v334 = vld [vmem:[%s300 + $0x8] sm:$0xff]
        %v335 = vld [vmem:[%s300 + $0x10] sm:$0xff]
        %v336 = vld [vmem:[%s300 + $0x18] sm:$0xff]
        %v337 = vld [vmem:[%s306] sm:$0xff]
        %v338 = vld [vmem:[%s306 + $0x8] sm:$0xff]
        %v339 = vld [vmem:[%s310] sm:$0xff]
        %v340 = vld [vmem:[%s315] sm:$0xff]
        %v341 = vld [vmem:[%s315 + $0x8] sm:$0xff]
        %v342 = vmul.f32 %v333, %v333
        %v343 = vmul.f32 %v334, %v334
        %v344 = vmul.f32 %v335, %v335
        %v345 = vmul.f32 %v336, %v336
        %v346 = vrot.slane %v342, 4
        %v347 = vadd.f32 %v342, %v346
        %v348 = vrot.slane %v347, 2
        %v349 = vadd.f32 %v347, %v348
        %v350 = vrot.slane %v349, 1
        %v351 = vadd.f32 %v349, %v350
        %v352 = vrot.slane %v343, 4
        %v353 = vadd.f32 %v343, %v352
        %v354 = vrot.slane %v353, 2
        %v355 = vadd.f32 %v353, %v354
        %v356 = vrot.slane %v355, 1
        %v357 = vadd.f32 %v355, %v356
        %v358 = vrot.slane %v344, 4
        %v359 = vadd.f32 %v344, %v358
        %v360 = vrot.slane %v359, 2
        %v361 = vadd.f32 %v359, %v360
        %v362 = vrot.slane %v361, 1
        %v363 = vadd.f32 %v361, %v362
        %v364 = vrot.slane %v345, 4
        %v365 = vadd.f32 %v345, %v364
        %v366 = vrot.slane %v365, 2
        %v367 = vadd.f32 %v365, %v366
        %v368 = vrot.slane %v367, 1
        %v369 = vadd.f32 %v367, %v368
        %v370 = vpack.c.bf16 %v338, %v337
        %v371 = vpack.c.bf16 %v333, %v333
        %v372 = vpack.c.bf16 %v334, %v334
        %v373 = vpack.c.bf16 %v335, %v335
        %v374 = vpack.c.bf16 %v336, %v336
        %vm375 = vcmask 64512
        %v377 = vsel %vm375, %v370, 0
        %vm379 = vcmask 1043456
        %v381 = vsel %vm379, %v371, 0
        %v384 = vsel %vm379, %v372, 0
        %v387 = vsel %vm379, %v373, 0
        %v390 = vsel %vm379, %v374, 0
        %392 = vmatpush.bf16.msra.mxu0 0
        %393 = vmatpush.bf16.msra.mxu0 0
        %394 = vmatpush.bf16.msra.mxu0 0
        %395 = vmatpush.bf16.msra.mxu0 0
        %396 = vmatpush.bf16.msra.mxu0 0
        %397 = vmatpush.bf16.msra.mxu0 0
        %398 = vmatpush.bf16.msra.mxu0 0
        %399 = vmatpush.bf16.msra.mxu0 %v381
        %400 = vmatmul.bf16.gmra.mxu0 %v377
        %v401 = vpop.f32.mrf.mxu0
        %v402 = vadd.f32 0.0, %v401
        %v403 = vpop.f32.mrf.mxu0
        %v404 = vadd.f32 0.0, %v403
        %405 = vdwg.mxu0
        %406 = vmatpush.bf16.msra.mxu0 0
        %407 = vmatpush.bf16.msra.mxu0 0
        %408 = vmatpush.bf16.msra.mxu0 0
        %409 = vmatpush.bf16.msra.mxu0 0
        %410 = vmatpush.bf16.msra.mxu0 0
        %411 = vmatpush.bf16.msra.mxu0 0
        %412 = vmatpush.bf16.msra.mxu0 0
        %413 = vmatpush.bf16.msra.mxu0 %v384
        %414 = vmatmul.bf16.gmra.mxu0 %v377
        %v415 = vpop.f32.mrf.mxu0
        %v416 = vadd.f32 0.0, %v415
        %v417 = vpop.f32.mrf.mxu0
        %v418 = vadd.f32 0.0, %v417
        %419 = vdwg.mxu0
        %420 = vmatpush.bf16.msra.mxu0 0
        %421 = vmatpush.bf16.msra.mxu0 0
        %422 = vmatpush.bf16.msra.mxu0 0
        %423 = vmatpush.bf16.msra.mxu0 0
        %424 = vmatpush.bf16.msra.mxu0 0
        %425 = vmatpush.bf16.msra.mxu0 0
        %426 = vmatpush.bf16.msra.mxu0 0
        %427 = vmatpush.bf16.msra.mxu0 %v387
        %428 = vmatmul.bf16.gmra.mxu0 %v377
        %v429 = vpop.f32.mrf.mxu0
        %v430 = vadd.f32 0.0, %v429
        %v431 = vpop.f32.mrf.mxu0
        %v432 = vadd.f32 0.0, %v431
        %433 = vdwg.mxu0
        %434 = vmatpush.bf16.msra.mxu0 0
        %435 = vmatpush.bf16.msra.mxu0 0
        %436 = vmatpush.bf16.msra.mxu0 0
        %437 = vmatpush.bf16.msra.mxu0 0
        %438 = vmatpush.bf16.msra.mxu0 0
        %439 = vmatpush.bf16.msra.mxu0 0
        %440 = vmatpush.bf16.msra.mxu0 0
        %441 = vmatpush.bf16.msra.mxu0 %v390
        %442 = vmatmul.bf16.gmra.mxu0 %v377
        %v443 = vpop.f32.mrf.mxu0
        %v444 = vadd.f32 0.0, %v443
        %v445 = vpop.f32.mrf.mxu0
        %v446 = vadd.f32 0.0, %v445
        %447 = vdwg.mxu0
        %v448 = vmul.f32 %v402, 2.0
        %v449 = vmul.f32 %v416, 2.0
        %v450 = vmul.f32 %v430, 2.0
        %v451 = vmul.f32 %v444, 2.0
        %v452 = vmul.f32 %v404, 2.0
        %v453 = vmul.f32 %v418, 2.0
        %v454 = vmul.f32 %v432, 2.0
        %v455 = vmul.f32 %v446, 2.0
        %457 = vset.pattern.permute.xlu0 0
        %458 = vperm.xlu0 %457, %v340
        %v459 = vpop.permute.xlu0 %458
        %462 = vset.pattern.permute.xlu0 0
        %463 = vperm.xlu0 %462, %v341
        %v464 = vpop.permute.xlu0 %463
        %v466 = vsub.f32 %v448, %v459
        %v467 = vsub.f32 %v449, %v459
        %v468 = vsub.f32 %v450, %v459
        %v469 = vsub.f32 %v451, %v459
        %v470 = vsub.f32 %v452, %v464
        %v471 = vsub.f32 %v453, %v464
        %v472 = vsub.f32 %v454, %v464
        %v473 = vsub.f32 %v455, %v464
        %v474 = vsub.f32 %v466, %v351
        %v475 = vsub.f32 %v467, %v357
        %v476 = vsub.f32 %v468, %v363
        %v477 = vsub.f32 %v469, %v369
        %v478 = vsub.f32 %v470, %v351
        %v479 = vsub.f32 %v471, %v357
        %v480 = vsub.f32 %v472, %v363
        %v481 = vsub.f32 %v473, %v369
        %v482 = vmax.f32 %v474, %v478
        %v483 = vrot.slane %v482, 4
        %v484 = vmax.f32 %v482, %v483
        %v485 = vrot.slane %v484, 2
        %v486 = vmax.f32 %v484, %v485
        %v487 = vrot.slane %v486, 1
        %v488 = vmax.f32 %v486, %v487
        %v489 = vmax.f32 %v475, %v479
        %v490 = vrot.slane %v489, 4
        %v491 = vmax.f32 %v489, %v490
        %v492 = vrot.slane %v491, 2
        %v493 = vmax.f32 %v491, %v492
        %v494 = vrot.slane %v493, 1
        %v495 = vmax.f32 %v493, %v494
        %v496 = vmax.f32 %v476, %v480
        %v497 = vrot.slane %v496, 4
        %v498 = vmax.f32 %v496, %v497
        %v499 = vrot.slane %v498, 2
        %v500 = vmax.f32 %v498, %v499
        %v501 = vrot.slane %v500, 1
        %v502 = vmax.f32 %v500, %v501
        %v503 = vmax.f32 %v477, %v481
        %v504 = vrot.slane %v503, 4
        %v505 = vmax.f32 %v503, %v504
        %v506 = vrot.slane %v505, 2
        %v507 = vmax.f32 %v505, %v506
        %v508 = vrot.slane %v507, 1
        %v509 = vmax.f32 %v507, %v508
        %v510 = vsub.f32 %v474, %v488
        %v511 = vsub.f32 %v475, %v495
        %v512 = vsub.f32 %v476, %v502
        %v513 = vsub.f32 %v477, %v509
        %v514 = vsub.f32 %v478, %v488
        %v515 = vsub.f32 %v479, %v495
        %v516 = vsub.f32 %v480, %v502
        %v517 = vsub.f32 %v481, %v509
        %v518 = vmul.f32 %v510, 1.442695
        %v519 = vpow.pop %v518
        %v520 = vmul.f32 %v511, 1.442695
        %v521 = vpow.pop %v520
        %v522 = vmul.f32 %v512, 1.442695
        %v523 = vpow.pop %v522
        %v524 = vmul.f32 %v513, 1.442695
        %v525 = vpow.pop %v524
        %v526 = vmul.f32 %v514, 1.442695
        %v527 = vpow.pop %v526
        %v528 = vmul.f32 %v515, 1.442695
        %v529 = vpow.pop %v528
        %v530 = vmul.f32 %v516, 1.442695
        %v531 = vpow.pop %v530
        %v532 = vmul.f32 %v517, 1.442695
        %v533 = vpow.pop %v532
        %v534 = vadd.f32 %v519, %v527
        %v535 = vrot.slane %v534, 4
        %v536 = vadd.f32 %v534, %v535
        %v537 = vrot.slane %v536, 2
        %v538 = vadd.f32 %v536, %v537
        %v539 = vrot.slane %v538, 1
        %v540 = vadd.f32 %v538, %v539
        %v541 = vadd.f32 %v521, %v529
        %v542 = vrot.slane %v541, 4
        %v543 = vadd.f32 %v541, %v542
        %v544 = vrot.slane %v543, 2
        %v545 = vadd.f32 %v543, %v544
        %v546 = vrot.slane %v545, 1
        %v547 = vadd.f32 %v545, %v546
        %v548 = vadd.f32 %v523, %v531
        %v549 = vrot.slane %v548, 4
        %v550 = vadd.f32 %v548, %v549
        %v551 = vrot.slane %v550, 2
        %v552 = vadd.f32 %v550, %v551
        %v553 = vrot.slane %v552, 1
        %v554 = vadd.f32 %v552, %v553
        %v555 = vadd.f32 %v525, %v533
        %v556 = vrot.slane %v555, 4
        %v557 = vadd.f32 %v555, %v556
        %v558 = vrot.slane %v557, 2
        %v559 = vadd.f32 %v557, %v558
        %v560 = vrot.slane %v559, 1
        %v561 = vadd.f32 %v559, %v560
        %v562 = vlog2.pop %v540
        %v563 = vmul.f32 %v562, 0.6931472
        %v564 = vlog2.pop %v547
        %v565 = vmul.f32 %v564, 0.6931472
        %v566 = vlog2.pop %v554
        %v567 = vmul.f32 %v566, 0.6931472
        %v568 = vlog2.pop %v561
        %v569 = vmul.f32 %v568, 0.6931472
        %v570 = vadd.f32 %v488, %v563
        %v571 = vadd.f32 %v495, %v565
        %v572 = vadd.f32 %v502, %v567
        %v573 = vadd.f32 %v509, %v569
        %v574 = vsub.f32 %v474, %v570
        %v575 = vsub.f32 %v475, %v571
        %v576 = vsub.f32 %v476, %v572
        %v577 = vsub.f32 %v477, %v573
        %v578 = vsub.f32 %v478, %v570
        %v579 = vsub.f32 %v479, %v571
        %v580 = vsub.f32 %v480, %v572
        %v581 = vsub.f32 %v481, %v573
        %v582 = vmul.f32 %v574, 1.442695
        %v583 = vpow.pop %v582
        %v584 = vmul.f32 %v575, 1.442695
        %v585 = vpow.pop %v584
        %v586 = vmul.f32 %v576, 1.442695
        %v587 = vpow.pop %v586
        %v588 = vmul.f32 %v577, 1.442695
        %v589 = vpow.pop %v588
        %v590 = vmul.f32 %v578, 1.442695
        %v591 = vpow.pop %v590
        %v592 = vmul.f32 %v579, 1.442695
        %v593 = vpow.pop %v592
        %v594 = vmul.f32 %v580, 1.442695
        %v595 = vpow.pop %v594
        %v596 = vmul.f32 %v581, 1.442695
        %v597 = vpow.pop %v596
        %v598 = vld [vmem:[#allocation2] sm:$0xff]
        %v599 = vld [vmem:[#allocation2 + $0x8] sm:$0xff]
        %v600 = vld [vmem:[#allocation2 + $0x10] sm:$0xff]
        %v601 = vld [vmem:[#allocation2 + $0x18] sm:$0xff]
        %v602 = vld [vmem:[#allocation2 + $0x20] sm:$0xff]
        %v603 = vld [vmem:[#allocation2 + $0x28] sm:$0xff]
        %v604 = vld [vmem:[#allocation2 + $0x30] sm:$0xff]
        %v605 = vld [vmem:[#allocation2 + $0x38] sm:$0xff]
        %vm606 = vcmp.gt.f32.partialorder %v583, 0.0
        %vm607 = vcmp.gt.f32.partialorder %v585, 0.0
        %vm608 = vcmp.gt.f32.partialorder %v587, 0.0
        %vm609 = vcmp.gt.f32.partialorder %v589, 0.0
        %vm610 = vcmp.gt.f32.partialorder %v591, 0.0
        %vm611 = vcmp.gt.f32.partialorder %v593, 0.0
        %vm612 = vcmp.gt.f32.partialorder %v595, 0.0
        %vm613 = vcmp.gt.f32.partialorder %v597, 0.0
        %v614 = vadd.f32 %v574, 2.7725887
        %v615 = vadd.f32 %v575, 2.7725887
        %v616 = vadd.f32 %v576, 2.7725887
        %v617 = vadd.f32 %v577, 2.7725887
        %v618 = vadd.f32 %v578, 2.7725887
        %v619 = vadd.f32 %v579, 2.7725887
        %v620 = vadd.f32 %v580, 2.7725887
        %v621 = vadd.f32 %v581, 2.7725887
        %v622 = vmul.f32 %v583, %v614
        %v623 = vmul.f32 %v585, %v615
        %v624 = vmul.f32 %v587, %v616
        %v625 = vmul.f32 %v589, %v617
        %v626 = vmul.f32 %v591, %v618
        %v627 = vmul.f32 %v593, %v619
        %v628 = vmul.f32 %v595, %v620
        %v629 = vmul.f32 %v597, %v621
        %v630 = vsel %vm606, %v622, 0.0
        %v631 = vsel %vm607, %v623, 0.0
        %v632 = vsel %vm608, %v624, 0.0
        %v633 = vsel %vm609, %v625, 0.0
        %v634 = vsel %vm610, %v626, 0.0
        %v635 = vsel %vm611, %v627, 0.0
        %v636 = vsel %vm612, %v628, 0.0
        %v637 = vsel %vm613, %v629, 0.0
        %v638 = vadd.f32 %v598, %v630
        %v639 = vadd.f32 %v599, %v631
        %v640 = vadd.f32 %v600, %v632
        %v641 = vadd.f32 %v601, %v633
        %v642 = vadd.f32 %v602, %v634
        %v643 = vadd.f32 %v603, %v635
        %v644 = vadd.f32 %v604, %v636
        %v645 = vadd.f32 %v605, %v637
        %646 = vst [vmem:[#allocation2] sm:$0xff] %v638
        %647 = vst [vmem:[#allocation2 + $0x8] sm:$0xff] %v639
        %648 = vst [vmem:[#allocation2 + $0x10] sm:$0xff] %v640
        %649 = vst [vmem:[#allocation2 + $0x18] sm:$0xff] %v641
        %650 = vst [vmem:[#allocation2 + $0x20] sm:$0xff] %v642
        %651 = vst [vmem:[#allocation2 + $0x28] sm:$0xff] %v643
        %652 = vst [vmem:[#allocation2 + $0x30] sm:$0xff] %v644
        %653 = vst [vmem:[#allocation2 + $0x38] sm:$0xff] %v645
        %v654 = vlaneseq
        %v655 = vshrl.u32 %v654, 7
        %v656 = vadd.s32 %v655, 8
        %vm657 = vcmp.eq.f32.partialorder %v474, %v488
        %vm658 = vcmp.eq.f32.partialorder %v475, %v495
        %vm659 = vcmp.eq.f32.partialorder %v476, %v502
        %vm660 = vcmp.eq.f32.partialorder %v477, %v509
        %vm661 = vcmp.eq.f32.partialorder %v478, %v488
        %vm662 = vcmp.eq.f32.partialorder %v479, %v495
        %vm663 = vcmp.eq.f32.partialorder %v480, %v502
        %vm664 = vcmp.eq.f32.partialorder %v481, %v509
        %v665 = vsel %vm657, %v655, 16
        %v666 = vsel %vm658, %v655, 16
        %v667 = vsel %vm659, %v655, 16
        %v668 = vsel %vm660, %v655, 16
        %v669 = vsel %vm661, %v656, 16
        %v670 = vsel %vm662, %v656, 16
        %v671 = vsel %vm663, %v656, 16
        %v672 = vsel %vm664, %v656, 16
        %vm673 = vcmp.lt.s32.totalorder %v665, %v669
        %v674 = vsel %vm673, %v665, %v669
        %v675 = vrot.slane %v674, 4
        %vm676 = vcmp.lt.s32.totalorder %v674, %v675
        %v677 = vsel %vm676, %v674, %v675
        %v678 = vrot.slane %v677, 2
        %vm679 = vcmp.lt.s32.totalorder %v677, %v678
        %v680 = vsel %vm679, %v677, %v678
        %v681 = vrot.slane %v680, 1
        %vm682 = vcmp.lt.s32.totalorder %v680, %v681
        %v683 = vsel %vm682, %v680, %v681
        %vm684 = vcmp.lt.s32.totalorder %v666, %v670
        %v685 = vsel %vm684, %v666, %v670
        %v686 = vrot.slane %v685, 4
        %vm687 = vcmp.lt.s32.totalorder %v685, %v686
        %v688 = vsel %vm687, %v685, %v686
        %v689 = vrot.slane %v688, 2
        %vm690 = vcmp.lt.s32.totalorder %v688, %v689
        %v691 = vsel %vm690, %v688, %v689
        %v692 = vrot.slane %v691, 1
        %vm693 = vcmp.lt.s32.totalorder %v691, %v692
        %v694 = vsel %vm693, %v691, %v692
        %vm695 = vcmp.lt.s32.totalorder %v667, %v671
        %v696 = vsel %vm695, %v667, %v671
        %v697 = vrot.slane %v696, 4
        %vm698 = vcmp.lt.s32.totalorder %v696, %v697
        %v699 = vsel %vm698, %v696, %v697
        %v700 = vrot.slane %v699, 2
        %vm701 = vcmp.lt.s32.totalorder %v699, %v700
        %v702 = vsel %vm701, %v699, %v700
        %v703 = vrot.slane %v702, 1
        %vm704 = vcmp.lt.s32.totalorder %v702, %v703
        %v705 = vsel %vm704, %v702, %v703
        %vm706 = vcmp.lt.s32.totalorder %v668, %v672
        %v707 = vsel %vm706, %v668, %v672
        %v708 = vrot.slane %v707, 4
        %vm709 = vcmp.lt.s32.totalorder %v707, %v708
        %v710 = vsel %vm709, %v707, %v708
        %v711 = vrot.slane %v710, 2
        %vm712 = vcmp.lt.s32.totalorder %v710, %v711
        %v713 = vsel %vm712, %v710, %v711
        %v714 = vrot.slane %v713, 1
        %vm715 = vcmp.lt.s32.totalorder %v713, %v714
        %v716 = vsel %vm715, %v713, %v714
        %vm717 = vcmp.eq.s32.totalorder %v683, 0
        %vm718 = vcmp.eq.s32.totalorder %v694, 0
        %vm719 = vcmp.eq.s32.totalorder %v705, 0
        %vm720 = vcmp.eq.s32.totalorder %v716, 0
        %v721 = vsel %vm717, 1, 0
        %v722 = vsel %vm718, 1, 0
        %v723 = vsel %vm719, 1, 0
        %v724 = vsel %vm720, 1, 0
        %vm725 = vcmp.eq.s32.totalorder %v721, 1
        %vm726 = vcmp.eq.s32.totalorder %v722, 1
        %vm727 = vcmp.eq.s32.totalorder %v723, 1
        %vm728 = vcmp.eq.s32.totalorder %v724, 1
        %730 = vset.pattern.permute.xlu0 0
        %731 = vperm.xlu0 %730, %v339
        %v732 = vpop.permute.xlu0 %731
        %v734 = vsel %vm725, %v732, 0.0
        %v735 = vsel %vm726, %v732, 0.0
        %v736 = vsel %vm727, %v732, 0.0
        %v737 = vsel %vm728, %v732, 0.0
        %vm738 = vcmp.eq.s32.totalorder %v683, 1
        %vm739 = vcmp.eq.s32.totalorder %v694, 1
        %vm740 = vcmp.eq.s32.totalorder %v705, 1
        %vm741 = vcmp.eq.s32.totalorder %v716, 1
        %v742 = vsel %vm738, 1, 0
        %v743 = vsel %vm739, 1, 0
        %v744 = vsel %vm740, 1, 0
        %v745 = vsel %vm741, 1, 0
        %vm746 = vcmp.eq.s32.totalorder %v742, 1
        %vm747 = vcmp.eq.s32.totalorder %v743, 1
        %vm748 = vcmp.eq.s32.totalorder %v744, 1
        %vm749 = vcmp.eq.s32.totalorder %v745, 1
        %750 = vset.pattern.permute.xlu0 1
        %751 = vperm.xlu0 %750, %v339
        %v752 = vpop.permute.xlu0 %751
        %v754 = vsel %vm746, %v752, %v734
        %v755 = vsel %vm747, %v752, %v735
        %v756 = vsel %vm748, %v752, %v736
        %v757 = vsel %vm749, %v752, %v737
        %vm758 = vcmp.eq.s32.totalorder %v683, 2
        %vm759 = vcmp.eq.s32.totalorder %v694, 2
        %vm760 = vcmp.eq.s32.totalorder %v705, 2
        %vm761 = vcmp.eq.s32.totalorder %v716, 2
        %v762 = vsel %vm758, 1, 0
        %v763 = vsel %vm759, 1, 0
        %v764 = vsel %vm760, 1, 0
        %v765 = vsel %vm761, 1, 0
        %vm766 = vcmp.eq.s32.totalorder %v762, 1
        %vm767 = vcmp.eq.s32.totalorder %v763, 1
        %vm768 = vcmp.eq.s32.totalorder %v764, 1
        %vm769 = vcmp.eq.s32.totalorder %v765, 1
        %770 = vset.pattern.permute.xlu0 2
        %771 = vperm.xlu0 %770, %v339
        %v772 = vpop.permute.xlu0 %771
        %v774 = vsel %vm766, %v772, %v754
        %v775 = vsel %vm767, %v772, %v755
        %v776 = vsel %vm768, %v772, %v756
        %v777 = vsel %vm769, %v772, %v757
        %vm778 = vcmp.eq.s32.totalorder %v683, 3
        %vm779 = vcmp.eq.s32.totalorder %v694, 3
        %vm780 = vcmp.eq.s32.totalorder %v705, 3
        %vm781 = vcmp.eq.s32.totalorder %v716, 3
        %v782 = vsel %vm778, 1, 0
        %v783 = vsel %vm779, 1, 0
        %v784 = vsel %vm780, 1, 0
        %v785 = vsel %vm781, 1, 0
        %vm786 = vcmp.eq.s32.totalorder %v782, 1
        %vm787 = vcmp.eq.s32.totalorder %v783, 1
        %vm788 = vcmp.eq.s32.totalorder %v784, 1
        %vm789 = vcmp.eq.s32.totalorder %v785, 1
        %790 = vset.pattern.permute.xlu0 3
        %791 = vperm.xlu0 %790, %v339
        %v792 = vpop.permute.xlu0 %791
        %v794 = vsel %vm786, %v792, %v774
        %v795 = vsel %vm787, %v792, %v775
        %v796 = vsel %vm788, %v792, %v776
        %v797 = vsel %vm789, %v792, %v777
        %vm798 = vcmp.eq.s32.totalorder %v683, 4
        %vm799 = vcmp.eq.s32.totalorder %v694, 4
        %vm800 = vcmp.eq.s32.totalorder %v705, 4
        %vm801 = vcmp.eq.s32.totalorder %v716, 4
        %v802 = vsel %vm798, 1, 0
        %v803 = vsel %vm799, 1, 0
        %v804 = vsel %vm800, 1, 0
        %v805 = vsel %vm801, 1, 0
        %vm806 = vcmp.eq.s32.totalorder %v802, 1
        %vm807 = vcmp.eq.s32.totalorder %v803, 1
        %vm808 = vcmp.eq.s32.totalorder %v804, 1
        %vm809 = vcmp.eq.s32.totalorder %v805, 1
        %810 = vset.pattern.permute.xlu0 4
        %811 = vperm.xlu0 %810, %v339
        %v812 = vpop.permute.xlu0 %811
        %v814 = vsel %vm806, %v812, %v794
        %v815 = vsel %vm807, %v812, %v795
        %v816 = vsel %vm808, %v812, %v796
        %v817 = vsel %vm809, %v812, %v797
        %vm818 = vcmp.eq.s32.totalorder %v683, 5
        %vm819 = vcmp.eq.s32.totalorder %v694, 5
        %vm820 = vcmp.eq.s32.totalorder %v705, 5
        %vm821 = vcmp.eq.s32.totalorder %v716, 5
        %v822 = vsel %vm818, 1, 0
        %v823 = vsel %vm819, 1, 0
        %v824 = vsel %vm820, 1, 0
        %v825 = vsel %vm821, 1, 0
        %vm826 = vcmp.eq.s32.totalorder %v822, 1
        %vm827 = vcmp.eq.s32.totalorder %v823, 1
        %vm828 = vcmp.eq.s32.totalorder %v824, 1
        %vm829 = vcmp.eq.s32.totalorder %v825, 1
        %830 = vset.pattern.permute.xlu0 5
        %831 = vperm.xlu0 %830, %v339
        %v832 = vpop.permute.xlu0 %831
        %v834 = vsel %vm826, %v832, %v814
        %v835 = vsel %vm827, %v832, %v815
        %v836 = vsel %vm828, %v832, %v816
        %v837 = vsel %vm829, %v832, %v817
        %vm838 = vcmp.eq.s32.totalorder %v683, 6
        %vm839 = vcmp.eq.s32.totalorder %v694, 6
        %vm840 = vcmp.eq.s32.totalorder %v705, 6
        %vm841 = vcmp.eq.s32.totalorder %v716, 6
        %v842 = vsel %vm838, 1, 0
        %v843 = vsel %vm839, 1, 0
        %v844 = vsel %vm840, 1, 0
        %v845 = vsel %vm841, 1, 0
        %vm846 = vcmp.eq.s32.totalorder %v842, 1
        %vm847 = vcmp.eq.s32.totalorder %v843, 1
        %vm848 = vcmp.eq.s32.totalorder %v844, 1
        %vm849 = vcmp.eq.s32.totalorder %v845, 1
        %850 = vset.pattern.permute.xlu0 6
        %851 = vperm.xlu0 %850, %v339
        %v852 = vpop.permute.xlu0 %851
        %v854 = vsel %vm846, %v852, %v834
        %v855 = vsel %vm847, %v852, %v835
        %v856 = vsel %vm848, %v852, %v836
        %v857 = vsel %vm849, %v852, %v837
        %vm858 = vcmp.eq.s32.totalorder %v683, 7
        %vm859 = vcmp.eq.s32.totalorder %v694, 7
        %vm860 = vcmp.eq.s32.totalorder %v705, 7
        %vm861 = vcmp.eq.s32.totalorder %v716, 7
        %v862 = vsel %vm858, 1, 0
        %v863 = vsel %vm859, 1, 0
        %v864 = vsel %vm860, 1, 0
        %v865 = vsel %vm861, 1, 0
        %vm866 = vcmp.eq.s32.totalorder %v862, 1
        %vm867 = vcmp.eq.s32.totalorder %v863, 1
        %vm868 = vcmp.eq.s32.totalorder %v864, 1
        %vm869 = vcmp.eq.s32.totalorder %v865, 1
        %870 = vset.pattern.permute.xlu0 7
        %871 = vperm.xlu0 %870, %v339
        %v872 = vpop.permute.xlu0 %871
        %v874 = vsel %vm866, %v872, %v854
        %v875 = vsel %vm867, %v872, %v855
        %v876 = vsel %vm868, %v872, %v856
        %v877 = vsel %vm869, %v872, %v857
        %vm878 = vcmp.eq.s32.totalorder %v683, 8
        %vm879 = vcmp.eq.s32.totalorder %v694, 8
        %vm880 = vcmp.eq.s32.totalorder %v705, 8
        %vm881 = vcmp.eq.s32.totalorder %v716, 8
        %v882 = vsel %vm878, 1, 0
        %v883 = vsel %vm879, 1, 0
        %v884 = vsel %vm880, 1, 0
        %v885 = vsel %vm881, 1, 0
        %vm886 = vcmp.eq.s32.totalorder %v882, 1
        %vm887 = vcmp.eq.s32.totalorder %v883, 1
        %vm888 = vcmp.eq.s32.totalorder %v884, 1
        %vm889 = vcmp.eq.s32.totalorder %v885, 1
        %890 = vset.pattern.permute.xlu0 8
        %891 = vperm.xlu0 %890, %v339
        %v892 = vpop.permute.xlu0 %891
        %v894 = vsel %vm886, %v892, %v874
        %v895 = vsel %vm887, %v892, %v875
        %v896 = vsel %vm888, %v892, %v876
        %v897 = vsel %vm889, %v892, %v877
        %vm898 = vcmp.eq.s32.totalorder %v683, 9
        %vm899 = vcmp.eq.s32.totalorder %v694, 9
        %vm900 = vcmp.eq.s32.totalorder %v705, 9
        %vm901 = vcmp.eq.s32.totalorder %v716, 9
        %v902 = vsel %vm898, 1, 0
        %v903 = vsel %vm899, 1, 0
        %v904 = vsel %vm900, 1, 0
        %v905 = vsel %vm901, 1, 0
        %vm906 = vcmp.eq.s32.totalorder %v902, 1
        %vm907 = vcmp.eq.s32.totalorder %v903, 1
        %vm908 = vcmp.eq.s32.totalorder %v904, 1
        %vm909 = vcmp.eq.s32.totalorder %v905, 1
        %910 = vset.pattern.permute.xlu0 9
        %911 = vperm.xlu0 %910, %v339
        %v912 = vpop.permute.xlu0 %911
        %v914 = vsel %vm906, %v912, %v894
        %v915 = vsel %vm907, %v912, %v895
        %v916 = vsel %vm908, %v912, %v896
        %v917 = vsel %vm909, %v912, %v897
        %vm918 = vcmp.eq.s32.totalorder %v683, 10
        %vm919 = vcmp.eq.s32.totalorder %v694, 10
        %vm920 = vcmp.eq.s32.totalorder %v705, 10
        %vm921 = vcmp.eq.s32.totalorder %v716, 10
        %v922 = vsel %vm918, 1, 0
        %v923 = vsel %vm919, 1, 0
        %v924 = vsel %vm920, 1, 0
        %v925 = vsel %vm921, 1, 0
        %vm926 = vcmp.eq.s32.totalorder %v922, 1
        %vm927 = vcmp.eq.s32.totalorder %v923, 1
        %vm928 = vcmp.eq.s32.totalorder %v924, 1
        %vm929 = vcmp.eq.s32.totalorder %v925, 1
        %930 = vset.pattern.permute.xlu0 10
        %931 = vperm.xlu0 %930, %v339
        %v932 = vpop.permute.xlu0 %931
        %v934 = vsel %vm926, %v932, %v914
        %v935 = vsel %vm927, %v932, %v915
        %v936 = vsel %vm928, %v932, %v916
        %v937 = vsel %vm929, %v932, %v917
        %vm938 = vcmp.eq.s32.totalorder %v683, 11
        %vm939 = vcmp.eq.s32.totalorder %v694, 11
        %vm940 = vcmp.eq.s32.totalorder %v705, 11
        %vm941 = vcmp.eq.s32.totalorder %v716, 11
        %v942 = vsel %vm938, 1, 0
        %v943 = vsel %vm939, 1, 0
        %v944 = vsel %vm940, 1, 0
        %v945 = vsel %vm941, 1, 0
        %vm946 = vcmp.eq.s32.totalorder %v942, 1
        %vm947 = vcmp.eq.s32.totalorder %v943, 1
        %vm948 = vcmp.eq.s32.totalorder %v944, 1
        %vm949 = vcmp.eq.s32.totalorder %v945, 1
        %950 = vset.pattern.permute.xlu0 11
        %951 = vperm.xlu0 %950, %v339
        %v952 = vpop.permute.xlu0 %951
        %v954 = vsel %vm946, %v952, %v934
        %v955 = vsel %vm947, %v952, %v935
        %v956 = vsel %vm948, %v952, %v936
        %v957 = vsel %vm949, %v952, %v937
        %vm958 = vcmp.eq.s32.totalorder %v683, 12
        %vm959 = vcmp.eq.s32.totalorder %v694, 12
        %vm960 = vcmp.eq.s32.totalorder %v705, 12
        %vm961 = vcmp.eq.s32.totalorder %v716, 12
        %v962 = vsel %vm958, 1, 0
        %v963 = vsel %vm959, 1, 0
        %v964 = vsel %vm960, 1, 0
        %v965 = vsel %vm961, 1, 0
        %vm966 = vcmp.eq.s32.totalorder %v962, 1
        %vm967 = vcmp.eq.s32.totalorder %v963, 1
        %vm968 = vcmp.eq.s32.totalorder %v964, 1
        %vm969 = vcmp.eq.s32.totalorder %v965, 1
        %970 = vset.pattern.permute.xlu0 12
        %971 = vperm.xlu0 %970, %v339
        %v972 = vpop.permute.xlu0 %971
        %v974 = vsel %vm966, %v972, %v954
        %v975 = vsel %vm967, %v972, %v955
        %v976 = vsel %vm968, %v972, %v956
        %v977 = vsel %vm969, %v972, %v957
        %vm978 = vcmp.eq.s32.totalorder %v683, 13
        %vm979 = vcmp.eq.s32.totalorder %v694, 13
        %vm980 = vcmp.eq.s32.totalorder %v705, 13
        %vm981 = vcmp.eq.s32.totalorder %v716, 13
        %v982 = vsel %vm978, 1, 0
        %v983 = vsel %vm979, 1, 0
        %v984 = vsel %vm980, 1, 0
        %v985 = vsel %vm981, 1, 0
        %vm986 = vcmp.eq.s32.totalorder %v982, 1
        %vm987 = vcmp.eq.s32.totalorder %v983, 1
        %vm988 = vcmp.eq.s32.totalorder %v984, 1
        %vm989 = vcmp.eq.s32.totalorder %v985, 1
        %990 = vset.pattern.permute.xlu0 13
        %991 = vperm.xlu0 %990, %v339
        %v992 = vpop.permute.xlu0 %991
        %v994 = vsel %vm986, %v992, %v974
        %v995 = vsel %vm987, %v992, %v975
        %v996 = vsel %vm988, %v992, %v976
        %v997 = vsel %vm989, %v992, %v977
        %vm998 = vcmp.eq.s32.totalorder %v683, 14
        %vm999 = vcmp.eq.s32.totalorder %v694, 14
        %vm1000 = vcmp.eq.s32.totalorder %v705, 14
        %vm1001 = vcmp.eq.s32.totalorder %v716, 14
        %v1002 = vsel %vm998, 1, 0
        %v1003 = vsel %vm999, 1, 0
        %v1004 = vsel %vm1000, 1, 0
        %v1005 = vsel %vm1001, 1, 0
        %vm1006 = vcmp.eq.s32.totalorder %v1002, 1
        %vm1007 = vcmp.eq.s32.totalorder %v1003, 1
        %vm1008 = vcmp.eq.s32.totalorder %v1004, 1
        %vm1009 = vcmp.eq.s32.totalorder %v1005, 1
        %1010 = vset.pattern.permute.xlu0 14
        %1011 = vperm.xlu0 %1010, %v339
        %v1012 = vpop.permute.xlu0 %1011
        %v1014 = vsel %vm1006, %v1012, %v994
        %v1015 = vsel %vm1007, %v1012, %v995
        %v1016 = vsel %vm1008, %v1012, %v996
        %v1017 = vsel %vm1009, %v1012, %v997
        %vm1018 = vcmp.eq.s32.totalorder %v683, 15
        %vm1019 = vcmp.eq.s32.totalorder %v694, 15
        %vm1020 = vcmp.eq.s32.totalorder %v705, 15
        %vm1021 = vcmp.eq.s32.totalorder %v716, 15
        %v1022 = vsel %vm1018, 1, 0
        %v1023 = vsel %vm1019, 1, 0
        %v1024 = vsel %vm1020, 1, 0
        %v1025 = vsel %vm1021, 1, 0
        %vm1026 = vcmp.eq.s32.totalorder %v1022, 1
        %vm1027 = vcmp.eq.s32.totalorder %v1023, 1
        %vm1028 = vcmp.eq.s32.totalorder %v1024, 1
        %vm1029 = vcmp.eq.s32.totalorder %v1025, 1
        %1030 = vset.pattern.permute.xlu0 15
        %1031 = vperm.xlu0 %1030, %v339
        %v1032 = vpop.permute.xlu0 %1031
        %v1034 = vsel %vm1026, %v1032, %v1014
        %v1035 = vsel %vm1027, %v1032, %v1015
        %v1036 = vsel %vm1028, %v1032, %v1016
        %v1037 = vsel %vm1029, %v1032, %v1017
        %1038 = vst [vmem:[%s286] sm:$0xff] %v1034
        %1039 = vst [vmem:[%s286 + $0x8] sm:$0xff] %v1035
        %1040 = vst [vmem:[%s286 + $0x10] sm:$0xff] %v1036
        %1041 = vst [vmem:[%s286 + $0x18] sm:$0xff] %v1037
        // Predicated region
        $region41: #{tpu_custom_call.1} parent=35 // pred_check
          %p1042 = pneg %p321
        $region42: #{tpu_custom_call.1} parent=35 // pred_check_branch
          %1044 = sbr.rel (%p1042) target = $region44
        $region43: #{tpu_custom_call.1} parent=35 // pred_region
          %v1045 = vld [vmem:[#allocation2] sm:$0xff]
          %v1046 = vld [vmem:[#allocation2 + $0x8] sm:$0xff]
          %v1047 = vld [vmem:[#allocation2 + $0x10] sm:$0xff]
          %v1048 = vld [vmem:[#allocation2 + $0x18] sm:$0xff]
          %v1049 = vld [vmem:[#allocation2 + $0x20] sm:$0xff]
          %v1050 = vld [vmem:[#allocation2 + $0x28] sm:$0xff]
          %v1051 = vld [vmem:[#allocation2 + $0x30] sm:$0xff]
          %v1052 = vld [vmem:[#allocation2 + $0x38] sm:$0xff]
          %v1053 = vadd.f32 %v1045, %v1046
          %v1054 = vadd.f32 %v1053, %v1047
          %v1055 = vadd.f32 %v1054, %v1048
          %v1056 = vadd.f32 %v1055, %v1049
          %v1057 = vadd.f32 %v1056, %v1050
          %v1058 = vadd.f32 %v1057, %v1051
          %v1059 = vadd.f32 %v1058, %v1052
          %1060 = vadd.xlane.f32.xlu0 %v1059
          %v1061 = vpop.xlane.xlu0 %1060
          %v1062 = vrot.slane %v1061, 4
          %v1063 = vadd.f32 %v1061, %v1062
          %v1064 = vrot.slane %v1063, 2
          %v1065 = vadd.f32 %v1063, %v1064
          %v1066 = vrot.slane %v1065, 1
          %v1067 = vadd.f32 %v1065, %v1066
          %s1068 = vtos %v1067
          %v1069 = vstv %s1068
          %vm1070 = vcmask 0
          %1071 = vst.msk [vmem:[%s319] sm:$0x1] %vm1070, %v1069
        $region44: #{tpu_custom_call.1} parent=35 // pred_fallthru
          _
        %s1072 = sand.u32 %s148, 1
        %s1073 = scalar_lea.sflag [#allocation4], %s1072
        %s1074 = sand.u32 %s148, 1
        %s1075 = smul.addr %s1074, 32
        %s1076 = scalar_lea.vmem [#allocation3], %s1075
        %p1077 = scmp.lt.s32.totalorder %s24, 1
        %s1078 = scalar_select %p1077, %s24, 1
        %s1079 = scalar_lea.vmem %s5, %s1078
        // Predicated region
        $region45: #{tpu_custom_call.1} parent=35 // pred_check
          %p1080 = pneg %p158
        $region46: #{tpu_custom_call.1} parent=35 // pred_check_branch
          %1082 = sbr.rel (%p1080) target = $region48
        $region47: #{tpu_custom_call.1} parent=35 // pred_region
          %s1083 = smul.u32 4, %s25
          %1085 = vsyncadd %s1073, 0
          %s1086 = smul.addr %s24, 4
          %s1087 = sadd.s32 %s1083, %s1086
          %s1088 = smul.addr %s1087, 8
          %s1089 = scalar_lea.hbm %s4, %s1088
          %s1091 = sshll.u32 %s1076, 4
          %s1092 = int_to_ptr.vmem [resolvable:$true] %s1091
          %s1093 = sshll.u32 %s1089, 4
          %s1094 = int_to_ptr.hbm [resolvable:$true] %s1093
          %1096 = dma.vmem_to_hbm [thread:$0]  %s1092, 512, %s1094, %s1073
        $region48: #{tpu_custom_call.1} parent=35 // pred_fallthru
          _
        // Predicated region
        $region49: #{tpu_custom_call.1} parent=35 // pred_check
          %p1097 = pneg %p184
        $region50: #{tpu_custom_call.1} parent=35 // pred_check_branch
          %1099 = sbr.rel (%p1097) target = $region52
        $region51: #{tpu_custom_call.1} parent=35 // pred_region
          _
        $region52: #{tpu_custom_call.1} parent=35 // pred_fallthru
          _
      $region36: #{tpu_custom_call.1} parent=5 // pred_fallthru
        _
      %p1100 = scmp.le.s32.totalorder 2, %s15
      // Predicated region
      $region53: #{tpu_custom_call.1} parent=5 // pred_check
        %p1101 = pneg %p1100
      $region54: #{tpu_custom_call.1} parent=5 // pred_check_branch
        %1103 = sbr.rel (%p1101) target = $region56
      $region55: #{tpu_custom_call.1} parent=5 // pred_region
        %s1104 = ssub.s32 %s15, 2
        // Predicated region
        $region57: #{tpu_custom_call.1} parent=55 // pred_check
          %p1105 = pneg %p164
        $region58: #{tpu_custom_call.1} parent=55 // pred_check_branch
          %1107 = sbr.rel (%p1105) target = $region60
        $region59: #{tpu_custom_call.1} parent=55 // pred_region
          %s1108 = sand.u32 %s149, 1
          %s1109 = scalar_lea.sflag [#allocation4], %s1108
          %s1110 = sand.u32 %s149, 1
          %s1111 = smul.addr %s1110, 32
          %s1112 = scalar_lea.vmem [#allocation3], %s1111
          %1114 = dma.done %s1109, 512
        $region60: #{tpu_custom_call.1} parent=55 // pred_fallthru
          _
        // Predicated region
        $region61: #{tpu_custom_call.1} parent=55 // pred_check
          %p1115 = pneg %p190
        $region62: #{tpu_custom_call.1} parent=55 // pred_check_branch
          %1117 = sbr.rel (%p1115) target = $region64
        $region63: #{tpu_custom_call.1} parent=55 // pred_region
          %p1118 = scmp.lt.s32.totalorder %s26, 1
          %s1119 = scalar_select %p1118, %s26, 1
          %s1120 = scalar_lea.vmem %s5, %s1119
        $region64: #{tpu_custom_call.1} parent=55 // pred_fallthru
          _
      $region56: #{tpu_custom_call.1} parent=5 // pred_fallthru
        _
    $region6: #{tpu_custom_call.1} parent=1 // loop_footer
      %s19 = sadd.s32 1, %s15
    $region7: #{tpu_custom_call.1} parent=1 // loop_footer_branch
      %14 = sbr.rel target = $region3
    $region8: #{tpu_custom_call.1} parent=1 // loop_exit
      _
    %1121 = vsyncpa [#allocation4], 1
    %s1122 = scalar_lea.sflag [#allocation4], 1
    %1123 = vsyncpa %s1122, 1

</llo_original>
